<compile_context>
chip_gen: v7x
topology: tpu7x:2x2x1
jax: 0.10.0
libtpu: 0.0.40
codegen_flags: <defaults>
</compile_context>

<pallas_src>
import functools

import jax
import jax.numpy as jnp
import numpy as np
from jax import lax
from jax.experimental import pallas as pl
from jax.experimental.pallas import tpu as pltpu

EPS = 1e-5  # PyTorch BatchNorm2d default eps
# TODO(synk): BatchNorm2d is folded in eval mode (running stats -> per-channel
# scale/bias); training-mode batch statistics are not computed.


# ---------------------------------------------------------------------------
# In-kernel depthwise conv via shifted adds (no padded scratch, no re-zeroing)
# ---------------------------------------------------------------------------
def _shift_rows(y, dh):
    """out[h] = y[h + dh], zero-filled outside [0, H).  Shift along the
    major (untiled) H axis via concat with zero rows."""
    if dh == 0:
        return y
    H = y.shape[0]
    pad = jnp.zeros((abs(dh),) + y.shape[1:], y.dtype)
    if dh > 0:
        return jnp.concatenate([y[dh:], pad], axis=0)
    return jnp.concatenate([pad, y[:H + dh]], axis=0)


def _depthwise_s1(y, wd, ksize):
    """Stride-1 depthwise KxK conv with zero padding K//2.

    y:  (H, W, M) f32 value
    wd: (K*K, M) f32 value (per-channel taps, BN scale already folded forward)
    Row shifts: zero-padded concat along H (major axis).
    Col shifts: pltpu.roll along the sublane (W) axis + iota mask for borders.
    """
    H, W, M = y.shape
    p = ksize // 2
    # Hoisted once: iota along W (sublane dim) for the border masks.
    w_idx = lax.broadcasted_iota(jnp.int32, (H, W, M), 1)
    acc = None
    for kh in range(ksize):
        dh = kh - p
        y_h = _shift_rows(y, dh)
        for kw in range(ksize):
            dw = kw - p
            if dw == 0:
                tap = y_h
            else:
                tap = pltpu.roll(y_h, (-dw) % W, axis=1)
                valid = (w_idx + dw >= 0) & (w_idx + dw < W)
                tap = jnp.where(valid, tap, 0.0)
            k = kh * ksize + kw
            term = tap * wd[k:k + 1, :]          # (H,W,M) * (1,M) broadcast
            acc = term if acc is None else acc + term
    return acc


# ---------------------------------------------------------------------------
# Fused ShuffleV2 block kernels (one pallas_call per block)
# ---------------------------------------------------------------------------
def _shuffle_block_s1_kernel(xp_ref, xm_ref, w1_ref, b1_ref, wd_ref, w3_ref,
                             b3_ref, o_ref, *, ksize):
    """stride==1: main branch on x_main + fused passthrough/concat of x_proj."""
    _, H, W, cin = xm_ref.shape
    proj_c = xp_ref.shape[3]
    mid = w1_ref.shape[1]
    cout = w3_ref.shape[1]

    # 1x1 conv (+folded BN bias) + ReLU
    xm = xm_ref[...].astype(jnp.float32).reshape(H * W, cin)
    y1 = jnp.dot(xm, w1_ref[...], preferred_element_type=jnp.float32)
    y1 = jnp.maximum(y1 + b1_ref[...], 0.0).reshape(H, W, mid)

    # depthwise KxK, stride 1 (middle BN folded into w3/b3)
    d = _depthwise_s1(y1, wd_ref[...], ksize)

    # 1x1 conv (+folded BN) + ReLU
    y3 = jnp.dot(d.reshape(H * W, mid), w3_ref[...],
                 preferred_element_type=jnp.float32)
    y3 = jnp.maximum(y3 + b3_ref[...], 0.0)

    # fused channel concat: [x_proj passthrough | branch_main]
    o_ref[:, :, :, :proj_c] = xp_ref[...].astype(o_ref.dtype)
    o_ref[:, :, :, proj_c:] = y3.reshape(1, H, W, cout).astype(o_ref.dtype)


def _shuffle_block_s2_kernel(x_ref, sel_ref, w1_ref, b1_ref, wd_ref, w3_ref,
                             b3_ref, pwd_ref, pw2_ref, pb2_ref, o_ref, *, ksize):
    """stride==2: both branches + concat fused; x read from HBM once."""
    _, H, W, cin = x_ref.shape
    _, ho, wo, _ = o_ref.shape
    mid = w1_ref.shape[1]
    cm = w3_ref.shape[1]

    x = x_ref[...].astype(jnp.float32).reshape(H, W, cin)
    sel = sel_ref[...]                                   # (ho*wo, H*W) 0/1

    # ---- branch_main: 1x1 -> ReLU -> dw KxK s2 -> 1x1 -> ReLU (BN folded) ----
    y1 = jnp.dot(x.reshape(H * W, cin), w1_ref[...],
                 preferred_element_type=jnp.float32)
    y1 = jnp.maximum(y1 + b1_ref[...], 0.0).reshape(H, W, mid)
    dm = _depthwise_s1(y1, wd_ref[...], ksize).reshape(H * W, mid)
    dm = jnp.dot(sel, dm, preferred_element_type=jnp.float32)   # stride-2 pick
    y3 = jnp.dot(dm, w3_ref[...], preferred_element_type=jnp.float32)
    y3 = jnp.maximum(y3 + b3_ref[...], 0.0)

    # ---- branch_proj: dw KxK s2 -> 1x1 -> ReLU (BN folded) ----
    dp = _depthwise_s1(x, pwd_ref[...], ksize).reshape(H * W, cin)
    dp = jnp.dot(sel, dp, preferred_element_type=jnp.float32)
    p2 = jnp.dot(dp, pw2_ref[...], preferred_element_type=jnp.float32)
    p2 = jnp.maximum(p2 + pb2_ref[...], 0.0)

    # fused channel concat: [branch_proj | branch_main]
    o_ref[:, :, :, :cin] = p2.reshape(1, ho, wo, cin).astype(o_ref.dtype)
    o_ref[:, :, :, cin:] = y3.reshape(1, ho, wo, cm).astype(o_ref.dtype)


# ---------------------------------------------------------------------------
# pallas_call wrappers
# ---------------------------------------------------------------------------
def _rep(shape):
    return pl.BlockSpec(shape, lambda *_: (0,) * len(shape))


def _compiler_params():
    return pltpu.CompilerParams(dimension_semantics=("parallel",),
                                vmem_limit_bytes=32 * 1024 * 1024)


def _make_stride2_selector(H, W, ho, wo):
    """0/1 matrix picking stride-2 output positions from the full-res grid."""
    sel = np.zeros((ho * wo, H * W), np.float32)
    for oh in range(ho):
        for ow in range(wo):
            sel[oh * wo + ow, (2 * oh) * W + 2 * ow] = 1.0
    return jnp.asarray(sel)


def _run_block_s1(x_proj, x_main, fp, *, ksize, oup):
    B, H, W, cin = x_main.shape
    mid = fp['w1f'].shape[1]
    cout = fp['w3f'].shape[1]
    assert x_proj.shape[-1] + cout == oup
    kernel = functools.partial(_shuffle_block_s1_kernel, ksize=ksize)
    return pl.pallas_call(
        kernel,
        out_shape=jax.ShapeDtypeStruct((B, H, W, oup), x_main.dtype),
        grid_spec=pltpu.PrefetchScalarGridSpec(
            num_scalar_prefetch=0,
            grid=(B,),
            in_specs=[
                pl.BlockSpec((1, H, W, x_proj.shape[-1]), lambda b: (b, 0, 0, 0)),
                pl.BlockSpec((1, H, W, cin), lambda b: (b, 0, 0, 0)),
                _rep((cin, mid)), _rep((1, mid)),
                _rep((ksize * ksize, mid)),
                _rep((mid, cout)), _rep((1, cout)),
            ],
            out_specs=pl.BlockSpec((1, H, W, oup), lambda b: (b, 0, 0, 0)),
        ),
        compiler_params=_compiler_params(),
    )(x_proj, x_main, fp['w1f'], fp['b1f'], fp['wdf'], fp['w3f'], fp['b3f'])


def _run_block_s2(x, fp, *, ksize, oup):
    B, H, W, cin = x.shape
    p = ksize // 2
    ho = (H + 2 * p - ksize) // 2 + 1
    wo = (W + 2 * p - ksize) // 2 + 1
    mid = fp['w1f'].shape[1]
    cm = fp['w3f'].shape[1]
    assert cin + cm == oup
    sel = _make_stride2_selector(H, W, ho, wo)
    kernel = functools.partial(_shuffle_block_s2_kernel, ksize=ksize)
    return pl.pallas_call(
        kernel,
        out_shape=jax.ShapeDtypeStruct((B, ho, wo, oup), x.dtype),
        grid_spec=pltpu.PrefetchScalarGridSpec(
            num_scalar_prefetch=0,
            grid=(B,),
            in_specs=[
                pl.BlockSpec((1, H, W, cin), lambda b: (b, 0, 0, 0)),
                _rep((ho * wo, H * W)),
                _rep((cin, mid)), _rep((1, mid)),
                _rep((ksize * ksize, mid)),
                _rep((mid, cm)), _rep((1, cm)),
                _rep((ksize * ksize, cin)),
                _rep((cin, cin)), _rep((1, cin)),
            ],
            out_specs=pl.BlockSpec((1, ho, wo, oup), lambda b: (b, 0, 0, 0)),
        ),
        compiler_params=_compiler_params(),
    )(x, sel, fp['w1f'], fp['b1f'], fp['wdf'], fp['w3f'], fp['b3f'],
      fp['pwdf'], fp['pw2f'], fp['pb2f'])


# ---------------------------------------------------------------------------
# Host-side BN folding (eval mode) into conv weights / biases
# ---------------------------------------------------------------------------
def _fold_params(p, stride):
    # conv1 -> BN1 -> ReLU :  x @ (w1*s1) + b1
    # dw    -> BN2 -> conv3 -> BN3 -> ReLU :
    #   d @ (s2[:,None]*w3*s3) + ((b2@w3)*s3 + b3)   (dw weights stay raw)
    fp = {
        'w1f': p['w1'] * p['s1'],
        'b1f': p['b1'],
        'wdf': p['wd'],
        'w3f': p['s2'][0][:, None] * p['w3'] * p['s3'],
        'b3f': ((p['b2'][0] @ p['w3']) * p['s3'][0] + p['b3'][0]).reshape(1, -1),
    }
    if stride == 2:
        fp['pwdf'] = p['p_wd']
        fp['pw2f'] = p['p_s1'][0][:, None] * p['p_w2'] * p['p_s2']
        fp['pb2f'] = ((p['p_b1'][0] @ p['p_w2']) * p['p_s2'][0]
                      + p['p_b2'][0]).reshape(1, -1)
    return fp


# ---------------------------------------------------------------------------
# ShuffleV2Block forward (NCHW in / NCHW out, matching PyTorch semantics)
# ---------------------------------------------------------------------------
def shuffle_v2_block_forward(x_nchw, params, *, inp, oup, mid, ksize, stride):
    assert stride in (1, 2)
    fp = _fold_params(params, stride)
    x = jnp.transpose(x_nchw, (0, 2, 3, 1))        # NCHW -> NHWC
    if stride == 1:
        B, H, W, C = x.shape
        assert C % 4 == 0 and C == 2 * inp
        # channel_shuffle + split (fuses with the entry transpose in XLA);
        # the passthrough copy + concat happen inside the kernel.
        xs = x.reshape(B, H, W, 2, C // 2)
        xs = jnp.swapaxes(xs, 3, 4).reshape(B, H, W, C)
        x_proj, x_main = xs[..., :C // 2], xs[..., C // 2:]
        y = _run_block_s1(x_proj, x_main, fp, ksize=ksize, oup=oup)
    else:
        y = _run_block_s2(x, fp, ksize=ksize, oup=oup)
    return jnp.transpose(y, (0, 3, 1, 2))          # NHWC -> NCHW


# ---------------------------------------------------------------------------
# Deterministic parameter construction (raw conv weights + eval-mode BN)
# ---------------------------------------------------------------------------
def make_params(key, inp, oup, mid, ksize, stride):
    outputs = oup - inp
    keys = iter(jax.random.split(key, 32))

    def conv_w(shape, scale=0.2):
        return scale * jax.random.normal(next(keys), shape, jnp.float32)

    def bn(c):
        gamma = 1.0 + 0.1 * jax.random.normal(next(keys), (c,), jnp.float32)
        beta = 0.1 * jax.random.normal(next(keys), (c,), jnp.float32)
        mean = 0.1 * jax.random.normal(next(keys), (c,), jnp.float32)
        var = jax.random.uniform(next(keys), (c,), jnp.float32,
                                 minval=0.5, maxval=1.5)
        scale = gamma / jnp.sqrt(var + EPS)
        bias = beta - mean * scale
        return scale.reshape(1, c), bias.reshape(1, c)

    p = {}
    p['w1'] = conv_w((inp, mid))                   # 1x1 conv (Cin, M)
    p['s1'], p['b1'] = bn(mid)
    p['wd'] = conv_w((ksize * ksize, mid))         # depthwise (K*K, M)
    p['s2'], p['b2'] = bn(mid)
    p['w3'] = conv_w((mid, outputs))               # 1x1 conv (M, Cout)
    p['s3'], p['b3'] = bn(outputs)
    if stride == 2:
        p['p_wd'] = conv_w((ksize * ksize, inp))
        p['p_s1'], p['p_b1'] = bn(inp)
        p['p_w2'] = conv_w((inp, inp))
        p['p_s2'], p['p_b2'] = bn(inp)
    return p


# ---------------------------------------------------------------------------
# Pure-JAX reference (literal, unfolded translation of the PyTorch module)
# ---------------------------------------------------------------------------
def _ref_branch_main(x, p, ksize, stride):
    pad = ksize // 2
    M = p['w1'].shape[1]
    y = jnp.einsum('bhwc,cm->bhwm', x, p['w1'], precision=lax.Precision.HIGHEST)
    y = jnp.maximum(y * p['s1'][0] + p['b1'][0], 0.0)
    wd = p['wd'].reshape(ksize, ksize, 1, M)
    y = lax.conv_general_dilated(y, wd, (stride, stride), [(pad, pad), (pad, pad)],
                                 dimension_numbers=('NHWC', 'HWIO', 'NHWC'),
                                 feature_group_count=M,
                                 precision=lax.Precision.HIGHEST)
    y = y * p['s2'][0] + p['b2'][0]
    y = jnp.einsum('bhwm,mo->bhwo', y, p['w3'], precision=lax.Precision.HIGHEST)
    return jnp.maximum(y * p['s3'][0] + p['b3'][0], 0.0)


def _ref_branch_proj(x, p, ksize, stride):
    pad = ksize // 2
    C = x.shape[-1]
    wd = p['p_wd'].reshape(ksize, ksize, 1, C)
    y = lax.conv_general_dilated(x, wd, (stride, stride), [(pad, pad), (pad, pad)],
                                 dimension_numbers=('NHWC', 'HWIO', 'NHWC'),
                                 feature_group_count=C,
                                 precision=lax.Precision.HIGHEST)
    y = y * p['p_s1'][0] + p['p_b1'][0]
    y = jnp.einsum('bhwc,cd->bhwd', y, p['p_w2'], precision=lax.Precision.HIGHEST)
    return jnp.maximum(y * p['p_s2'][0] + p['p_b2'][0], 0.0)


def reference_forward(x_nchw, params, *, inp, oup, mid, ksize, stride):
    x = jnp.transpose(x_nchw, (0, 2, 3, 1))
    B, H, W, C = x.shape
    if stride == 1:
        xs = x.reshape(B, H, W, 2, C // 2)
        xs = jnp.swapaxes(xs, 3, 4).reshape(B, H, W, C)
        x_proj, x_main = xs[..., :C // 2], xs[..., C // 2:]
        y = jnp.concatenate([x_proj, _ref_branch_main(x_main, params, ksize, stride)],
                            axis=-1)
    else:
        y = jnp.concatenate([_ref_branch_proj(x, params, ksize, stride),
                             _ref_branch_main(x, params, ksize, stride)], axis=-1)
    return jnp.transpose(y, (0, 3, 1, 2))


# ---------------------------------------------------------------------------
if __name__ == "__main__":
    inp, oup, mid, ksize = 4, 8, 4, 3
    B, H, W = 2, 16, 16
    key = jax.random.PRNGKey(0)
    k1, k2, k3, k4 = jax.random.split(key, 4)

    # ---- stride == 1 (input channels = 2*inp, channel shuffle path) ----
    x1 = jax.random.normal(k1, (B, 2 * inp, H, W), jnp.float32)   # NCHW
    p1 = make_params(k2, inp, oup, mid, ksize, 1)
    out1 = shuffle_v2_block_forward(x1, p1, inp=inp, oup=oup, mid=mid,
                                    ksize=ksize, stride=1)
    out1 = jax.block_until_ready(out1)
    assert out1.shape == (B, oup, H, W), out1.shape
    ref1 = reference_forward(x1, p1, inp=inp, oup=oup, mid=mid,
                             ksize=ksize, stride=1)
    np.testing.assert_allclose(np.asarray(out1), np.asarray(ref1),
                               rtol=5e-3, atol=5e-3)

    # ---- stride == 2 (both branches fused in one kernel) ----
    x2 = jax.random.normal(k3, (B, inp, H, W), jnp.float32)       # NCHW
    p2 = make_params(k4, inp, oup, mid, ksize, 2)
    out2 = shuffle_v2_block_forward(x2, p2, inp=inp, oup=oup, mid=mid,
                                    ksize=ksize, stride=2)
    out2 = jax.block_until_ready(out2)
    assert out2.shape == (B, oup, H // 2, W // 2), out2.shape
    ref2 = reference_forward(x2, p2, inp=inp, oup=oup, mid=mid,
                             ksize=ksize, stride=2)
    np.testing.assert_allclose(np.asarray(out2), np.asarray(ref2),
                               rtol=5e-3, atol=5e-3)

    print("KERNEL_OK")
</pallas_src>

<mosaic_0001>
module attributes {stable_mosaic.version = 11 : i64} {
  func.func @_shuffle_block_s1_kernel(%arg0: i32, %arg1: memref<1x16x16x4xf32, #tpu.memory_space<vmem>>, %arg2: memref<1x16x16x4xf32, #tpu.memory_space<vmem>>, %arg3: memref<4x4xf32, #tpu.memory_space<vmem>>, %arg4: memref<1x4xf32, #tpu.memory_space<vmem>>, %arg5: memref<9x4xf32, #tpu.memory_space<vmem>>, %arg6: memref<4x4xf32, #tpu.memory_space<vmem>>, %arg7: memref<1x4xf32, #tpu.memory_space<vmem>>, %arg8: memref<1x16x16x8xf32, #tpu.memory_space<vmem>>) attributes {dimension_semantics = [#tpu.dimension_semantics<parallel>], iteration_bounds = array<i64: 2>, scalar_prefetch = 0 : i64, scratch_operands = 0 : i64, tpu.core_type = #tpu.core_type<tc>, window_params = [{transform_indices = @transform_0, window_bounds = array<i64: 1, 16, 16, 4>}, {transform_indices = @transform_1, window_bounds = array<i64: 1, 16, 16, 4>}, {pipeline_mode = #tpu.pipeline_mode<synchronous>, transform_indices = @transform_2, window_bounds = array<i64: 4, 4>}, {pipeline_mode = #tpu.pipeline_mode<synchronous>, transform_indices = @transform_3, window_bounds = array<i64: 1, 4>}, {pipeline_mode = #tpu.pipeline_mode<synchronous>, transform_indices = @transform_4, window_bounds = array<i64: 9, 4>}, {pipeline_mode = #tpu.pipeline_mode<synchronous>, transform_indices = @transform_5, window_bounds = array<i64: 4, 4>}, {pipeline_mode = #tpu.pipeline_mode<synchronous>, transform_indices = @transform_6, window_bounds = array<i64: 1, 4>}, {transform_indices = @transform_7, window_bounds = array<i64: 1, 16, 16, 8>}]} {
    %c0 = arith.constant 0 : index
    %c0_0 = arith.constant 0 : index
    %c0_1 = arith.constant 0 : index
    %c0_2 = arith.constant 0 : index
    %0 = vector.load %arg2[%c0, %c0_0, %c0_1, %c0_2] : memref<1x16x16x4xf32, #tpu.memory_space<vmem>>, vector<1x16x16x4xf32>
    %1 = vector.shape_cast %0 : vector<1x16x16x4xf32> to vector<256x4xf32>
    %c0_3 = arith.constant 0 : index
    %c0_4 = arith.constant 0 : index
    %2 = vector.load %arg3[%c0_3, %c0_4] : memref<4x4xf32, #tpu.memory_space<vmem>>, vector<4x4xf32>
    %cst = arith.constant dense<0.000000e+00> : vector<256x4xf32>
    %3 = tpu.matmul %1, %2, %cst {dimension_numbers = #tpu.dot_dimension_numbers<[1], [0], [0], [1], [0, 0, 1, 1], [], []>} : vector<256x4xf32>, vector<4x4xf32>, vector<256x4xf32> -> vector<256x4xf32>
    %c0_5 = arith.constant 0 : index
    %c0_6 = arith.constant 0 : index
    %4 = vector.load %arg4[%c0_5, %c0_6] : memref<1x4xf32, #tpu.memory_space<vmem>>, vector<1x4xf32>
    %5 = vector.broadcast %4 : vector<1x4xf32> to vector<256x4xf32>
    %6 = arith.addf %3, %5 : vector<256x4xf32>
    %cst_7 = arith.constant 0.000000e+00 : f32
    %7 = vector.broadcast %cst_7 : f32 to vector<256x4xf32>
    %8 = arith.maximumf %6, %7 : vector<256x4xf32>
    %9 = vector.shape_cast %8 : vector<256x4xf32> to vector<16x16x4xf32>
    %c0_8 = arith.constant 0 : index
    %c0_9 = arith.constant 0 : index
    %10 = vector.load %arg5[%c0_8, %c0_9] : memref<9x4xf32, #tpu.memory_space<vmem>>, vector<9x4xf32>
    %11 = tpu.iota {dimensions = array<i32: 1>} : vector<16x16x4xi32>
    %cst_10 = arith.constant 0.000000e+00 : f32
    %12 = vector.broadcast %cst_10 : f32 to vector<1x16x4xf32>
    %13 = vector.extract_strided_slice %9 {offsets = [0, 0, 0], sizes = [15, 16, 4], strides = [1, 1, 1]} : vector<16x16x4xf32> to vector<15x16x4xf32>
    %14 = tpu.concatenate %12, %13 in 0 : vector<1x16x4xf32>, vector<15x16x4xf32> -> vector<16x16x4xf32>
    %c1_i32 = arith.constant 1 : i32
    %15 = tpu.dynamic_rotate %14 by %c1_i32 dim 1 : vector<16x16x4xf32>, i32 -> vector<16x16x4xf32>
    %c-1_i32 = arith.constant -1 : i32
    %16 = vector.broadcast %c-1_i32 : i32 to vector<16x16x4xi32>
    %17 = arith.addi %11, %16 : vector<16x16x4xi32>
    %c0_i32 = arith.constant 0 : i32
    %18 = vector.broadcast %c0_i32 : i32 to vector<16x16x4xi32>
    %19 = arith.cmpi sge, %17, %18 : vector<16x16x4xi32>
    %c-1_i32_11 = arith.constant -1 : i32
    %20 = vector.broadcast %c-1_i32_11 : i32 to vector<16x16x4xi32>
    %21 = arith.addi %11, %20 : vector<16x16x4xi32>
    %c16_i32 = arith.constant 16 : i32
    %22 = vector.broadcast %c16_i32 : i32 to vector<16x16x4xi32>
    %23 = arith.cmpi slt, %21, %22 : vector<16x16x4xi32>
    %24 = arith.andi %19, %23 : vector<16x16x4xi1>
    %cst_12 = arith.constant 0.000000e+00 : f32
    %25 = vector.broadcast %cst_12 : f32 to vector<16x16x4xf32>
    %26 = arith.select %24, %15, %25 : vector<16x16x4xi1>, vector<16x16x4xf32>
    %27 = vector.extract_strided_slice %10 {offsets = [0, 0], sizes = [1, 4], strides = [1, 1]} : vector<9x4xf32> to vector<1x4xf32>
    %28 = vector.shape_cast %27 : vector<1x4xf32> to vector<1x1x4xf32>
    %29 = vector.broadcast %28 : vector<1x1x4xf32> to vector<16x16x4xf32>
    %30 = arith.mulf %26, %29 : vector<16x16x4xf32>
    %31 = vector.extract_strided_slice %10 {offsets = [1, 0], sizes = [1, 4], strides = [1, 1]} : vector<9x4xf32> to vector<1x4xf32>
    %32 = vector.shape_cast %31 : vector<1x4xf32> to vector<1x1x4xf32>
    %33 = vector.broadcast %32 : vector<1x1x4xf32> to vector<16x16x4xf32>
    %34 = arith.mulf %14, %33 : vector<16x16x4xf32>
    %35 = arith.addf %30, %34 : vector<16x16x4xf32>
    %c15_i32 = arith.constant 15 : i32
    %36 = tpu.dynamic_rotate %14 by %c15_i32 dim 1 : vector<16x16x4xf32>, i32 -> vector<16x16x4xf32>
    %c1_i32_13 = arith.constant 1 : i32
    %37 = vector.broadcast %c1_i32_13 : i32 to vector<16x16x4xi32>
    %38 = arith.addi %11, %37 : vector<16x16x4xi32>
    %c0_i32_14 = arith.constant 0 : i32
    %39 = vector.broadcast %c0_i32_14 : i32 to vector<16x16x4xi32>
    %40 = arith.cmpi sge, %38, %39 : vector<16x16x4xi32>
    %c1_i32_15 = arith.constant 1 : i32
    %41 = vector.broadcast %c1_i32_15 : i32 to vector<16x16x4xi32>
    %42 = arith.addi %11, %41 : vector<16x16x4xi32>
    %c16_i32_16 = arith.constant 16 : i32
    %43 = vector.broadcast %c16_i32_16 : i32 to vector<16x16x4xi32>
    %44 = arith.cmpi slt, %42, %43 : vector<16x16x4xi32>
    %45 = arith.andi %40, %44 : vector<16x16x4xi1>
    %cst_17 = arith.constant 0.000000e+00 : f32
    %46 = vector.broadcast %cst_17 : f32 to vector<16x16x4xf32>
    %47 = arith.select %45, %36, %46 : vector<16x16x4xi1>, vector<16x16x4xf32>
    %48 = vector.extract_strided_slice %10 {offsets = [2, 0], sizes = [1, 4], strides = [1, 1]} : vector<9x4xf32> to vector<1x4xf32>
    %49 = vector.shape_cast %48 : vector<1x4xf32> to vector<1x1x4xf32>
    %50 = vector.broadcast %49 : vector<1x1x4xf32> to vector<16x16x4xf32>
    %51 = arith.mulf %47, %50 : vector<16x16x4xf32>
    %52 = arith.addf %35, %51 : vector<16x16x4xf32>
    %c1_i32_18 = arith.constant 1 : i32
    %53 = tpu.dynamic_rotate %9 by %c1_i32_18 dim 1 : vector<16x16x4xf32>, i32 -> vector<16x16x4xf32>
    %c-1_i32_19 = arith.constant -1 : i32
    %54 = vector.broadcast %c-1_i32_19 : i32 to vector<16x16x4xi32>
    %55 = arith.addi %11, %54 : vector<16x16x4xi32>
    %c0_i32_20 = arith.constant 0 : i32
    %56 = vector.broadcast %c0_i32_20 : i32 to vector<16x16x4xi32>
    %57 = arith.cmpi sge, %55, %56 : vector<16x16x4xi32>
    %c-1_i32_21 = arith.constant -1 : i32
    %58 = vector.broadcast %c-1_i32_21 : i32 to vector<16x16x4xi32>
    %59 = arith.addi %11, %58 : vector<16x16x4xi32>
    %c16_i32_22 = arith.constant 16 : i32
    %60 = vector.broadcast %c16_i32_22 : i32 to vector<16x16x4xi32>
    %61 = arith.cmpi slt, %59, %60 : vector<16x16x4xi32>
    %62 = arith.andi %57, %61 : vector<16x16x4xi1>
    %cst_23 = arith.constant 0.000000e+00 : f32
    %63 = vector.broadcast %cst_23 : f32 to vector<16x16x4xf32>
    %64 = arith.select %62, %53, %63 : vector<16x16x4xi1>, vector<16x16x4xf32>
    %65 = vector.extract_strided_slice %10 {offsets = [3, 0], sizes = [1, 4], strides = [1, 1]} : vector<9x4xf32> to vector<1x4xf32>
    %66 = vector.shape_cast %65 : vector<1x4xf32> to vector<1x1x4xf32>
    %67 = vector.broadcast %66 : vector<1x1x4xf32> to vector<16x16x4xf32>
    %68 = arith.mulf %64, %67 : vector<16x16x4xf32>
    %69 = arith.addf %52, %68 : vector<16x16x4xf32>
    %70 = vector.extract_strided_slice %10 {offsets = [4, 0], sizes = [1, 4], strides = [1, 1]} : vector<9x4xf32> to vector<1x4xf32>
    %71 = vector.shape_cast %70 : vector<1x4xf32> to vector<1x1x4xf32>
    %72 = vector.broadcast %71 : vector<1x1x4xf32> to vector<16x16x4xf32>
    %73 = arith.mulf %9, %72 : vector<16x16x4xf32>
    %74 = arith.addf %69, %73 : vector<16x16x4xf32>
    %c15_i32_24 = arith.constant 15 : i32
    %75 = tpu.dynamic_rotate %9 by %c15_i32_24 dim 1 : vector<16x16x4xf32>, i32 -> vector<16x16x4xf32>
    %c1_i32_25 = arith.constant 1 : i32
    %76 = vector.broadcast %c1_i32_25 : i32 to vector<16x16x4xi32>
    %77 = arith.addi %11, %76 : vector<16x16x4xi32>
    %c0_i32_26 = arith.constant 0 : i32
    %78 = vector.broadcast %c0_i32_26 : i32 to vector<16x16x4xi32>
    %79 = arith.cmpi sge, %77, %78 : vector<16x16x4xi32>
    %c1_i32_27 = arith.constant 1 : i32
    %80 = vector.broadcast %c1_i32_27 : i32 to vector<16x16x4xi32>
    %81 = arith.addi %11, %80 : vector<16x16x4xi32>
    %c16_i32_28 = arith.constant 16 : i32
    %82 = vector.broadcast %c16_i32_28 : i32 to vector<16x16x4xi32>
    %83 = arith.cmpi slt, %81, %82 : vector<16x16x4xi32>
    %84 = arith.andi %79, %83 : vector<16x16x4xi1>
    %cst_29 = arith.constant 0.000000e+00 : f32
    %85 = vector.broadcast %cst_29 : f32 to vector<16x16x4xf32>
    %86 = arith.select %84, %75, %85 : vector<16x16x4xi1>, vector<16x16x4xf32>
    %87 = vector.extract_strided_slice %10 {offsets = [5, 0], sizes = [1, 4], strides = [1, 1]} : vector<9x4xf32> to vector<1x4xf32>
    %88 = vector.shape_cast %87 : vector<1x4xf32> to vector<1x1x4xf32>
    %89 = vector.broadcast %88 : vector<1x1x4xf32> to vector<16x16x4xf32>
    %90 = arith.mulf %86, %89 : vector<16x16x4xf32>
    %91 = arith.addf %74, %90 : vector<16x16x4xf32>
    %cst_30 = arith.constant 0.000000e+00 : f32
    %92 = vector.broadcast %cst_30 : f32 to vector<1x16x4xf32>
    %93 = vector.extract_strided_slice %9 {offsets = [1, 0, 0], sizes = [15, 16, 4], strides = [1, 1, 1]} : vector<16x16x4xf32> to vector<15x16x4xf32>
    %94 = tpu.concatenate %93, %92 in 0 : vector<15x16x4xf32>, vector<1x16x4xf32> -> vector<16x16x4xf32>
    %c1_i32_31 = arith.constant 1 : i32
    %95 = tpu.dynamic_rotate %94 by %c1_i32_31 dim 1 : vector<16x16x4xf32>, i32 -> vector<16x16x4xf32>
    %c-1_i32_32 = arith.constant -1 : i32
    %96 = vector.broadcast %c-1_i32_32 : i32 to vector<16x16x4xi32>
    %97 = arith.addi %11, %96 : vector<16x16x4xi32>
    %c0_i32_33 = arith.constant 0 : i32
    %98 = vector.broadcast %c0_i32_33 : i32 to vector<16x16x4xi32>
    %99 = arith.cmpi sge, %97, %98 : vector<16x16x4xi32>
    %c-1_i32_34 = arith.constant -1 : i32
    %100 = vector.broadcast %c-1_i32_34 : i32 to vector<16x16x4xi32>
    %101 = arith.addi %11, %100 : vector<16x16x4xi32>
    %c16_i32_35 = arith.constant 16 : i32
    %102 = vector.broadcast %c16_i32_35 : i32 to vector<16x16x4xi32>
    %103 = arith.cmpi slt, %101, %102 : vector<16x16x4xi32>
    %104 = arith.andi %99, %103 : vector<16x16x4xi1>
    %cst_36 = arith.constant 0.000000e+00 : f32
    %105 = vector.broadcast %cst_36 : f32 to vector<16x16x4xf32>
    %106 = arith.select %104, %95, %105 : vector<16x16x4xi1>, vector<16x16x4xf32>
    %107 = vector.extract_strided_slice %10 {offsets = [6, 0], sizes = [1, 4], strides = [1, 1]} : vector<9x4xf32> to vector<1x4xf32>
    %108 = vector.shape_cast %107 : vector<1x4xf32> to vector<1x1x4xf32>
    %109 = vector.broadcast %108 : vector<1x1x4xf32> to vector<16x16x4xf32>
    %110 = arith.mulf %106, %109 : vector<16x16x4xf32>
    %111 = arith.addf %91, %110 : vector<16x16x4xf32>
    %112 = vector.extract_strided_slice %10 {offsets = [7, 0], sizes = [1, 4], strides = [1, 1]} : vector<9x4xf32> to vector<1x4xf32>
    %113 = vector.shape_cast %112 : vector<1x4xf32> to vector<1x1x4xf32>
    %114 = vector.broadcast %113 : vector<1x1x4xf32> to vector<16x16x4xf32>
    %115 = arith.mulf %94, %114 : vector<16x16x4xf32>
    %116 = arith.addf %111, %115 : vector<16x16x4xf32>
    %c15_i32_37 = arith.constant 15 : i32
    %117 = tpu.dynamic_rotate %94 by %c15_i32_37 dim 1 : vector<16x16x4xf32>, i32 -> vector<16x16x4xf32>
    %c1_i32_38 = arith.constant 1 : i32
    %118 = vector.broadcast %c1_i32_38 : i32 to vector<16x16x4xi32>
    %119 = arith.addi %11, %118 : vector<16x16x4xi32>
    %c0_i32_39 = arith.constant 0 : i32
    %120 = vector.broadcast %c0_i32_39 : i32 to vector<16x16x4xi32>
    %121 = arith.cmpi sge, %119, %120 : vector<16x16x4xi32>
    %c1_i32_40 = arith.constant 1 : i32
    %122 = vector.broadcast %c1_i32_40 : i32 to vector<16x16x4xi32>
    %123 = arith.addi %11, %122 : vector<16x16x4xi32>
    %c16_i32_41 = arith.constant 16 : i32
    %124 = vector.broadcast %c16_i32_41 : i32 to vector<16x16x4xi32>
    %125 = arith.cmpi slt, %123, %124 : vector<16x16x4xi32>
    %126 = arith.andi %121, %125 : vector<16x16x4xi1>
    %cst_42 = arith.constant 0.000000e+00 : f32
    %127 = vector.broadcast %cst_42 : f32 to vector<16x16x4xf32>
    %128 = arith.select %126, %117, %127 : vector<16x16x4xi1>, vector<16x16x4xf32>
    %129 = vector.extract_strided_slice %10 {offsets = [8, 0], sizes = [1, 4], strides = [1, 1]} : vector<9x4xf32> to vector<1x4xf32>
    %130 = vector.shape_cast %129 : vector<1x4xf32> to vector<1x1x4xf32>
    %131 = vector.broadcast %130 : vector<1x1x4xf32> to vector<16x16x4xf32>
    %132 = arith.mulf %128, %131 : vector<16x16x4xf32>
    %133 = arith.addf %116, %132 : vector<16x16x4xf32>
    %134 = vector.shape_cast %133 : vector<16x16x4xf32> to vector<256x4xf32>
    %c0_43 = arith.constant 0 : index
    %c0_44 = arith.constant 0 : index
    %135 = vector.load %arg6[%c0_43, %c0_44] : memref<4x4xf32, #tpu.memory_space<vmem>>, vector<4x4xf32>
    %cst_45 = arith.constant dense<0.000000e+00> : vector<256x4xf32>
    %136 = tpu.matmul %134, %135, %cst_45 {dimension_numbers = #tpu.dot_dimension_numbers<[1], [0], [0], [1], [0, 0, 1, 1], [], []>} : vector<256x4xf32>, vector<4x4xf32>, vector<256x4xf32> -> vector<256x4xf32>
    %c0_46 = arith.constant 0 : index
    %c0_47 = arith.constant 0 : index
    %137 = vector.load %arg7[%c0_46, %c0_47] : memref<1x4xf32, #tpu.memory_space<vmem>>, vector<1x4xf32>
    %138 = vector.broadcast %137 : vector<1x4xf32> to vector<256x4xf32>
    %139 = arith.addf %136, %138 : vector<256x4xf32>
    %cst_48 = arith.constant 0.000000e+00 : f32
    %140 = vector.broadcast %cst_48 : f32 to vector<256x4xf32>
    %141 = arith.maximumf %139, %140 : vector<256x4xf32>
    %c0_49 = arith.constant 0 : index
    %c0_50 = arith.constant 0 : index
    %c0_51 = arith.constant 0 : index
    %c0_52 = arith.constant 0 : index
    %142 = vector.load %arg1[%c0_49, %c0_50, %c0_51, %c0_52] : memref<1x16x16x4xf32, #tpu.memory_space<vmem>>, vector<1x16x16x4xf32>
    %c0_53 = arith.constant 0 : index
    %c0_54 = arith.constant 0 : index
    %c0_55 = arith.constant 0 : index
    %c0_56 = arith.constant 0 : index
    %143 = vector.load %arg8[%c0_53, %c0_54, %c0_55, %c0_56] : memref<1x16x16x8xf32, #tpu.memory_space<vmem>>, vector<1x16x16x4xf32>
    tpu.vector_store %arg8[%c0_53, %c0_54, %c0_55, %c0_56], %142 {strides = array<i32>} : memref<1x16x16x8xf32, #tpu.memory_space<vmem>>, vector<1x16x16x4xf32>,
    %144 = vector.shape_cast %141 : vector<256x4xf32> to vector<1x16x16x4xf32>
    %c0_57 = arith.constant 0 : index
    %c0_58 = arith.constant 0 : index
    %c0_59 = arith.constant 0 : index
    %c4 = arith.constant 4 : index
    %145 = vector.load %arg8[%c0_57, %c0_58, %c0_59, %c4] : memref<1x16x16x8xf32, #tpu.memory_space<vmem>>, vector<1x16x16x4xf32>
    tpu.vector_store %arg8[%c0_57, %c0_58, %c0_59, %c4], %144 {strides = array<i32>} : memref<1x16x16x8xf32, #tpu.memory_space<vmem>>, vector<1x16x16x4xf32>,
    return
  }
  func.func @transform_0(%arg0: i32) -> (i32, i32, i32, i32) {
    %c0_i32 = arith.constant 0 : i32
    %c0_i32_0 = arith.constant 0 : i32
    %c0_i32_1 = arith.constant 0 : i32
    %c0_i32_2 = arith.constant 0 : i32
    return %arg0, %c0_i32, %c0_i32_0, %c0_i32_1 : i32, i32, i32, i32
  }
  func.func @transform_1(%arg0: i32) -> (i32, i32, i32, i32) {
    %c0_i32 = arith.constant 0 : i32
    %c0_i32_0 = arith.constant 0 : i32
    %c0_i32_1 = arith.constant 0 : i32
    %c0_i32_2 = arith.constant 0 : i32
    return %arg0, %c0_i32, %c0_i32_0, %c0_i32_1 : i32, i32, i32, i32
  }
  func.func @transform_2(%arg0: i32) -> (i32, i32) {
    %c0_i32 = arith.constant 0 : i32
    %c0_i32_0 = arith.constant 0 : i32
    %c0_i32_1 = arith.constant 0 : i32
    return %c0_i32, %c0_i32_0 : i32, i32
  }
  func.func @transform_3(%arg0: i32) -> (i32, i32) {
    %c0_i32 = arith.constant 0 : i32
    %c0_i32_0 = arith.constant 0 : i32
    %c0_i32_1 = arith.constant 0 : i32
    return %c0_i32, %c0_i32_0 : i32, i32
  }
  func.func @transform_4(%arg0: i32) -> (i32, i32) {
    %c0_i32 = arith.constant 0 : i32
    %c0_i32_0 = arith.constant 0 : i32
    %c0_i32_1 = arith.constant 0 : i32
    return %c0_i32, %c0_i32_0 : i32, i32
  }
  func.func @transform_5(%arg0: i32) -> (i32, i32) {
    %c0_i32 = arith.constant 0 : i32
    %c0_i32_0 = arith.constant 0 : i32
    %c0_i32_1 = arith.constant 0 : i32
    return %c0_i32, %c0_i32_0 : i32, i32
  }
  func.func @transform_6(%arg0: i32) -> (i32, i32) {
    %c0_i32 = arith.constant 0 : i32
    %c0_i32_0 = arith.constant 0 : i32
    %c0_i32_1 = arith.constant 0 : i32
    return %c0_i32, %c0_i32_0 : i32, i32
  }
  func.func @transform_7(%arg0: i32) -> (i32, i32, i32, i32) {
    %c0_i32 = arith.constant 0 : i32
    %c0_i32_0 = arith.constant 0 : i32
    %c0_i32_1 = arith.constant 0 : i32
    %c0_i32_2 = arith.constant 0 : i32
    return %arg0, %c0_i32, %c0_i32_0, %c0_i32_1 : i32, i32, i32, i32
  }
}

</mosaic_0001>

<llo_original>
// kernel: tpu_custom_call.1
$region0: #{tpu_custom_call.1}
  #allocation0 [shape = 'u32[]', space=smem, size = 0x4, offset = 0x4, fixed_abs, tag = 'smem constant byte address 0x4 - core index']
  #allocation1 [shape = 'u32[144,128]{1,0:T(1,128)}', space=vmem, size = 0x12000, scoped, tag = 'internal scratch']
  %s0 = inlined_call_operand.vmem [shape: f32[2,16,16,4], index: 0, kind: input, shape index: {}]
  %s1 = inlined_call_operand.vmem [shape: f32[2,16,16,4], index: 1, kind: input, shape index: {}]
  %s2 = inlined_call_operand.vmem [shape: f32[4,4], index: 2, kind: input, shape index: {}]
  %s3 = inlined_call_operand.vmem [shape: f32[1,4], index: 3, kind: input, shape index: {}]
  %s4 = inlined_call_operand.vmem [shape: f32[9,4], index: 4, kind: input, shape index: {}]
  %s5 = inlined_call_operand.vmem [shape: f32[4,4], index: 5, kind: input, shape index: {}]
  %s6 = inlined_call_operand.vmem [shape: f32[1,4], index: 6, kind: input, shape index: {}]
  %s7 = inlined_call_operand.vmem [shape: f32[2,16,16,8], index: 7, kind: output, shape index: {}]
  %s8 = sld [smem:[#allocation0]]
  $region61: #{tpu_custom_call.1} parent=0
    _
  %s10 = ssub.s32 1, %s8
  %s11 = scalar_select 0, %s10, %s8
  loop: start=0, step=1, limit=4
  $region2: #{tpu_custom_call.1} parent=0 // loop_pre_header
    _
  $region3: #{tpu_custom_call.1} parent=0 // loop_header
    %s13 = sphi 0, %s17
    %p14 = scmp.ge.s32.totalorder %s13, 4
    %s23 = sphi 0, %s25
    %s26 = sphi 0, %s23
    %s27 = sphi 0, %s26
    %s43 = sphi 0, %s27
    %s49 = sphi 0, %s51
    %s52 = sphi 0, %s49
    %s53 = sphi 0, %s52
    %s69 = sphi 0, %s53
    %s73 = sphi 0, %s73
    %s75 = sphi 0, %s73
    %s76 = sphi 0, %s75
    %s90 = sphi 0, %s76
    %s94 = sphi 0, %s94
    %s96 = sphi 0, %s94
    %s97 = sphi 0, %s96
    %s111 = sphi 0, %s97
    %s115 = sphi 0, %s115
    %s117 = sphi 0, %s115
    %s118 = sphi 0, %s117
    %s132 = sphi 0, %s118
    %s136 = sphi 0, %s136
    %s138 = sphi 0, %s136
    %s139 = sphi 0, %s138
    %s153 = sphi 0, %s139
    %s157 = sphi 0, %s157
    %s159 = sphi 0, %s157
    %s160 = sphi 0, %s159
    %s174 = sphi 0, %s160
    %s180 = sphi 0, %s182
    %s183 = sphi 0, %s180
    %s184 = sphi 0, %s183
    %s200 = sphi 0, %s184
  $region4: #{tpu_custom_call.1} parent=0 // loop_header_branch
    %16 = sbr.rel (%p14) target = $region8
  $region5: #{tpu_custom_call.1} parent=0 // loop_body
    %s18 = ssub.s32 %s13, 1
    %s19 = ssub.s32 %s13, 2
    %s20 = sadd.s32 %s13, 1
    %s21 = ssub.s32 %s13, %s20
    %p22 = scmp.eq.s32.totalorder %s21, 0
    %s24 = sadd.s32 %s23, 1
    %s25 = scalar_select %p22, %s23, %s24
    %p28 = pneg %p22
    %p29 = scmp.eq.s32.totalorder %s13, 1
    %p30 = por %p28, %p29
    %p31 = scmp.ne.s32.totalorder %s23, %s26
    %p32 = scmp.eq.s32.totalorder %s13, 0
    %p33 = por %p31, %p32
    %p34 = scmp.ne.s32.totalorder %s23, %s26
    %p35 = scmp.eq.s32.totalorder %s18, 1
    %p36 = por %p34, %p35
    %p37 = scmp.ne.s32.totalorder %s26, %s27
    %p38 = scmp.eq.s32.totalorder %s18, 0
    %p39 = por %p37, %p38
    %p40 = scmp.ne.s32.totalorder %s26, %s27
    %p41 = scmp.eq.s32.totalorder %s19, 1
    %p42 = por %p40, %p41
    %p44 = scmp.ne.s32.totalorder %s27, %s43
    %p45 = scmp.eq.s32.totalorder %s19, 0
    %p46 = por %p44, %p45
    %s47 = ssub.s32 %s13, %s20
    %p48 = scmp.eq.s32.totalorder %s47, 0
    %s50 = sadd.s32 %s49, 1
    %s51 = scalar_select %p48, %s49, %s50
    %p54 = pneg %p48
    %p55 = scmp.eq.s32.totalorder %s13, 1
    %p56 = por %p54, %p55
    %p57 = scmp.ne.s32.totalorder %s49, %s52
    %p58 = scmp.eq.s32.totalorder %s13, 0
    %p59 = por %p57, %p58
    %p60 = scmp.ne.s32.totalorder %s49, %s52
    %p61 = scmp.eq.s32.totalorder %s18, 1
    %p62 = por %p60, %p61
    %p63 = scmp.ne.s32.totalorder %s52, %s53
    %p64 = scmp.eq.s32.totalorder %s18, 0
    %p65 = por %p63, %p64
    %p66 = scmp.ne.s32.totalorder %s52, %s53
    %p67 = scmp.eq.s32.totalorder %s19, 1
    %p68 = por %p66, %p67
    %p70 = scmp.ne.s32.totalorder %s53, %s69
    %p71 = scmp.eq.s32.totalorder %s19, 0
    %p72 = por %p70, %p71
    %s74 = sadd.s32 %s73, 1
    %p77 = scmp.eq.s32.totalorder %s13, 1
    %p78 = scmp.ne.s32.totalorder %s73, %s75
    %p79 = scmp.eq.s32.totalorder %s13, 0
    %p80 = por %p78, %p79
    %p81 = scmp.ne.s32.totalorder %s73, %s75
    %p82 = scmp.eq.s32.totalorder %s18, 1
    %p83 = por %p81, %p82
    %p84 = scmp.ne.s32.totalorder %s75, %s76
    %p85 = scmp.eq.s32.totalorder %s18, 0
    %p86 = por %p84, %p85
    %p87 = scmp.ne.s32.totalorder %s75, %s76
    %p88 = scmp.eq.s32.totalorder %s19, 1
    %p89 = por %p87, %p88
    %p91 = scmp.ne.s32.totalorder %s76, %s90
    %p92 = scmp.eq.s32.totalorder %s19, 0
    %p93 = por %p91, %p92
    %s95 = sadd.s32 %s94, 1
    %p98 = scmp.eq.s32.totalorder %s13, 1
    %p99 = scmp.ne.s32.totalorder %s94, %s96
    %p100 = scmp.eq.s32.totalorder %s13, 0
    %p101 = por %p99, %p100
    %p102 = scmp.ne.s32.totalorder %s94, %s96
    %p103 = scmp.eq.s32.totalorder %s18, 1
    %p104 = por %p102, %p103
    %p105 = scmp.ne.s32.totalorder %s96, %s97
    %p106 = scmp.eq.s32.totalorder %s18, 0
    %p107 = por %p105, %p106
    %p108 = scmp.ne.s32.totalorder %s96, %s97
    %p109 = scmp.eq.s32.totalorder %s19, 1
    %p110 = por %p108, %p109
    %p112 = scmp.ne.s32.totalorder %s97, %s111
    %p113 = scmp.eq.s32.totalorder %s19, 0
    %p114 = por %p112, %p113
    %s116 = sadd.s32 %s115, 1
    %p119 = scmp.eq.s32.totalorder %s13, 1
    %p120 = scmp.ne.s32.totalorder %s115, %s117
    %p121 = scmp.eq.s32.totalorder %s13, 0
    %p122 = por %p120, %p121
    %p123 = scmp.ne.s32.totalorder %s115, %s117
    %p124 = scmp.eq.s32.totalorder %s18, 1
    %p125 = por %p123, %p124
    %p126 = scmp.ne.s32.totalorder %s117, %s118
    %p127 = scmp.eq.s32.totalorder %s18, 0
    %p128 = por %p126, %p127
    %p129 = scmp.ne.s32.totalorder %s117, %s118
    %p130 = scmp.eq.s32.totalorder %s19, 1
    %p131 = por %p129, %p130
    %p133 = scmp.ne.s32.totalorder %s118, %s132
    %p134 = scmp.eq.s32.totalorder %s19, 0
    %p135 = por %p133, %p134
    %s137 = sadd.s32 %s136, 1
    %p140 = scmp.eq.s32.totalorder %s13, 1
    %p141 = scmp.ne.s32.totalorder %s136, %s138
    %p142 = scmp.eq.s32.totalorder %s13, 0
    %p143 = por %p141, %p142
    %p144 = scmp.ne.s32.totalorder %s136, %s138
    %p145 = scmp.eq.s32.totalorder %s18, 1
    %p146 = por %p144, %p145
    %p147 = scmp.ne.s32.totalorder %s138, %s139
    %p148 = scmp.eq.s32.totalorder %s18, 0
    %p149 = por %p147, %p148
    %p150 = scmp.ne.s32.totalorder %s138, %s139
    %p151 = scmp.eq.s32.totalorder %s19, 1
    %p152 = por %p150, %p151
    %p154 = scmp.ne.s32.totalorder %s139, %s153
    %p155 = scmp.eq.s32.totalorder %s19, 0
    %p156 = por %p154, %p155
    %s158 = sadd.s32 %s157, 1
    %p161 = scmp.eq.s32.totalorder %s13, 1
    %p162 = scmp.ne.s32.totalorder %s157, %s159
    %p163 = scmp.eq.s32.totalorder %s13, 0
    %p164 = por %p162, %p163
    %p165 = scmp.ne.s32.totalorder %s157, %s159
    %p166 = scmp.eq.s32.totalorder %s18, 1
    %p167 = por %p165, %p166
    %p168 = scmp.ne.s32.totalorder %s159, %s160
    %p169 = scmp.eq.s32.totalorder %s18, 0
    %p170 = por %p168, %p169
    %p171 = scmp.ne.s32.totalorder %s159, %s160
    %p172 = scmp.eq.s32.totalorder %s19, 1
    %p173 = por %p171, %p172
    %p175 = scmp.ne.s32.totalorder %s160, %s174
    %p176 = scmp.eq.s32.totalorder %s19, 0
    %p177 = por %p175, %p176
    %s178 = ssub.s32 %s13, %s20
    %p179 = scmp.eq.s32.totalorder %s178, 0
    %s181 = sadd.s32 %s180, 1
    %s182 = scalar_select %p179, %s180, %s181
    %p185 = pneg %p179
    %p186 = scmp.eq.s32.totalorder %s13, 1
    %p187 = por %p185, %p186
    %p188 = scmp.ne.s32.totalorder %s180, %s183
    %p189 = scmp.eq.s32.totalorder %s13, 0
    %p190 = por %p188, %p189
    %p191 = scmp.ne.s32.totalorder %s180, %s183
    %p192 = scmp.eq.s32.totalorder %s18, 1
    %p193 = por %p191, %p192
    %p194 = scmp.ne.s32.totalorder %s183, %s184
    %p195 = scmp.eq.s32.totalorder %s18, 0
    %p196 = por %p194, %p195
    %p197 = scmp.ne.s32.totalorder %s183, %s184
    %p198 = scmp.eq.s32.totalorder %s19, 1
    %p199 = por %p197, %p198
    %p201 = scmp.ne.s32.totalorder %s184, %s200
    %p202 = scmp.eq.s32.totalorder %s19, 0
    %p203 = por %p201, %p202
    %p204 = scmp.le.s32.totalorder 1, %s13
    %p205 = scmp.lt.s32.totalorder %s13, 3
    %p206 = pnand %p204, %p205
    %p207 = pneg %p206
    // Predicated region
    $region9: #{tpu_custom_call.1} parent=5 // pred_check
      _
    $region10: #{tpu_custom_call.1} parent=5 // pred_check_branch
      %209 = sbr.rel (%p206) target = $region12
    $region11: #{tpu_custom_call.1} parent=5 // pred_region
      %s210 = ssub.s32 %s13, 1
      // Predicated region
      $region13: #{tpu_custom_call.1} parent=11 // pred_check
        %p211 = pneg %p86
      $region14: #{tpu_custom_call.1} parent=11 // pred_check_branch
        %213 = sbr.rel (%p211) target = $region16
      $region15: #{tpu_custom_call.1} parent=11 // pred_region
        _
      $region16: #{tpu_custom_call.1} parent=11 // pred_fallthru
        _
      // Predicated region
      $region17: #{tpu_custom_call.1} parent=11 // pred_check
        %p214 = pneg %p107
      $region18: #{tpu_custom_call.1} parent=11 // pred_check_branch
        %216 = sbr.rel (%p214) target = $region20
      $region19: #{tpu_custom_call.1} parent=11 // pred_region
        _
      $region20: #{tpu_custom_call.1} parent=11 // pred_fallthru
        _
      // Predicated region
      $region21: #{tpu_custom_call.1} parent=11 // pred_check
        %p217 = pneg %p128
      $region22: #{tpu_custom_call.1} parent=11 // pred_check_branch
        %219 = sbr.rel (%p217) target = $region24
      $region23: #{tpu_custom_call.1} parent=11 // pred_region
        _
      $region24: #{tpu_custom_call.1} parent=11 // pred_fallthru
        _
      // Predicated region
      $region25: #{tpu_custom_call.1} parent=11 // pred_check
        %p220 = pneg %p149
      $region26: #{tpu_custom_call.1} parent=11 // pred_check_branch
        %222 = sbr.rel (%p220) target = $region28
      $region27: #{tpu_custom_call.1} parent=11 // pred_region
        _
      $region28: #{tpu_custom_call.1} parent=11 // pred_fallthru
        _
      // Predicated region
      $region29: #{tpu_custom_call.1} parent=11 // pred_check
        %p223 = pneg %p170
      $region30: #{tpu_custom_call.1} parent=11 // pred_check_branch
        %225 = sbr.rel (%p223) target = $region32
      $region31: #{tpu_custom_call.1} parent=11 // pred_region
        _
      $region32: #{tpu_custom_call.1} parent=11 // pred_fallthru
        _
    $region12: #{tpu_custom_call.1} parent=5 // pred_fallthru
      _
    %p226 = scmp.lt.s32.totalorder %s13, 2
    // Predicated region
    $region33: #{tpu_custom_call.1} parent=5 // pred_check
      %p227 = pneg %p226
    $region34: #{tpu_custom_call.1} parent=5 // pred_check_branch
      %229 = sbr.rel (%p227) target = $region36
    $region35: #{tpu_custom_call.1} parent=5 // pred_region
      // Predicated region
      $region37: #{tpu_custom_call.1} parent=35 // pred_check
        %p230 = pneg %p33
      $region38: #{tpu_custom_call.1} parent=35 // pred_check_branch
        %232 = sbr.rel (%p230) target = $region40
      $region39: #{tpu_custom_call.1} parent=35 // pred_region
        %p233 = scmp.lt.s32.totalorder %s13, 1
        %s234 = scalar_select %p233, %s13, 1
        %s235 = smul.addr %s234, 32
        %s236 = smul.addr %s235, 8
        %s237 = scalar_lea.vmem %s0, %s236
      $region40: #{tpu_custom_call.1} parent=35 // pred_fallthru
        _
      // Predicated region
      $region41: #{tpu_custom_call.1} parent=35 // pred_check
        %p238 = pneg %p59
      $region42: #{tpu_custom_call.1} parent=35 // pred_check_branch
        %240 = sbr.rel (%p238) target = $region44
      $region43: #{tpu_custom_call.1} parent=35 // pred_region
        %p241 = scmp.lt.s32.totalorder %s13, 1
        %s242 = scalar_select %p241, %s13, 1
        %s243 = smul.addr %s242, 32
        %s244 = smul.addr %s243, 8
        %s245 = scalar_lea.vmem %s1, %s244
      $region44: #{tpu_custom_call.1} parent=35 // pred_fallthru
        _
    $region36: #{tpu_custom_call.1} parent=5 // pred_fallthru
      _
    %p246 = scmp.le.s32.totalorder 1, %s13
    %p247 = scmp.lt.s32.totalorder %s13, 3
    %p248 = pnand %p246, %p247
    %p249 = pneg %p248
    // Predicated region
    $region45: #{tpu_custom_call.1} parent=5 // pred_check
      _
    $region46: #{tpu_custom_call.1} parent=5 // pred_check_branch
      %251 = sbr.rel (%p248) target = $region48
    $region47: #{tpu_custom_call.1} parent=5 // pred_region
      %s252 = ssub.s32 %s13, 1
      %p253 = scmp.lt.s32.totalorder %s18, 1
      %s254 = scalar_select %p253, %s18, 1
      %s255 = smul.addr %s254, 32
      %s256 = smul.addr %s255, 8
      %s257 = scalar_lea.vmem %s0, %s256
      %p258 = pneg %p39
      %p259 = pneg %p36
      %p260 = scmp.lt.s32.totalorder %s18, 1
      %s261 = scalar_select %p260, %s18, 1
      %s262 = smul.addr %s261, 32
      %s263 = smul.addr %s262, 8
      %s264 = scalar_lea.vmem %s1, %s263
      %p265 = pneg %p65
      %p266 = pneg %p62
      %p267 = pneg %p86
      %p268 = pneg %p83
      %p269 = pneg %p107
      %p270 = pneg %p104
      %p271 = pneg %p128
      %p272 = pneg %p125
      %p273 = pneg %p149
      %p274 = pneg %p146
      %p275 = pneg %p170
      %p276 = pneg %p167
      %p277 = pneg %p196
      %p278 = pneg %p193
      %p279 = scmp.lt.s32.totalorder %s18, 1
      %s280 = scalar_select %p279, %s18, 1
      %s281 = smul.addr %s280, 32
      %s282 = smul.addr %s281, 8
      %s283 = scalar_lea.vmem %s7, %s282
      %p284 = scmp.lt.s32.totalorder %s18, 1
      %s285 = scalar_select %p284, %s18, 1
      %s286 = smul.addr %s285, 32
      %s287 = smul.addr %s286, 8
      %s288 = scalar_lea.vmem %s0, %s287
      %p289 = scmp.lt.s32.totalorder %s18, 1
      %s290 = scalar_select %p289, %s18, 1
      %s291 = smul.addr %s290, 32
      %s292 = smul.addr %s291, 8
      %s293 = scalar_lea.vmem %s1, %s292
      %p294 = scmp.lt.s32.totalorder %s18, 1
      %s295 = scalar_select %p294, %s18, 1
      %s296 = smul.addr %s295, 32
      %s297 = smul.addr %s296, 8
      %s298 = scalar_lea.vmem %s7, %s297
      %v299 = vld [vmem:[%s293] sm:$0xff]
      %v300 = vld [vmem:[%s293 + $0x8] sm:$0xff]
      %v301 = vld [vmem:[%s293 + $0x10] sm:$0xff]
      %v302 = vld [vmem:[%s293 + $0x18] sm:$0xff]
      %v303 = vld [vmem:[%s293 + $0x20] sm:$0xff]
      %v304 = vld [vmem:[%s293 + $0x28] sm:$0xff]
      %v305 = vld [vmem:[%s293 + $0x30] sm:$0xff]
      %v306 = vld [vmem:[%s293 + $0x38] sm:$0xff]
      %v307 = vld [vmem:[%s293 + $0x40] sm:$0xff]
      %v308 = vld [vmem:[%s293 + $0x48] sm:$0xff]
      %v309 = vld [vmem:[%s293 + $0x50] sm:$0xff]
      %v310 = vld [vmem:[%s293 + $0x58] sm:$0xff]
      %v311 = vld [vmem:[%s293 + $0x60] sm:$0xff]
      %v312 = vld [vmem:[%s293 + $0x68] sm:$0xff]
      %v313 = vld [vmem:[%s293 + $0x70] sm:$0xff]
      %v314 = vld [vmem:[%s293 + $0x78] sm:$0xff]
      %v315 = vld [vmem:[%s293 + $0x80] sm:$0xff]
      %v316 = vld [vmem:[%s293 + $0x88] sm:$0xff]
      %v317 = vld [vmem:[%s293 + $0x90] sm:$0xff]
      %v318 = vld [vmem:[%s293 + $0x98] sm:$0xff]
      %v319 = vld [vmem:[%s293 + $0xa0] sm:$0xff]
      %v320 = vld [vmem:[%s293 + $0xa8] sm:$0xff]
      %v321 = vld [vmem:[%s293 + $0xb0] sm:$0xff]
      %v322 = vld [vmem:[%s293 + $0xb8] sm:$0xff]
      %v323 = vld [vmem:[%s293 + $0xc0] sm:$0xff]
      %v324 = vld [vmem:[%s293 + $0xc8] sm:$0xff]
      %v325 = vld [vmem:[%s293 + $0xd0] sm:$0xff]
      %v326 = vld [vmem:[%s293 + $0xd8] sm:$0xff]
      %v327 = vld [vmem:[%s293 + $0xe0] sm:$0xff]
      %v328 = vld [vmem:[%s293 + $0xe8] sm:$0xff]
      %v329 = vld [vmem:[%s293 + $0xf0] sm:$0xff]
      %v330 = vld [vmem:[%s293 + $0xf8] sm:$0xff]
      %v331 = vld [vmem:[%s2] sm:$0xf]
      %v332 = vld [vmem:[%s3] sm:$0x1]
      %v334 = vlaneseq
      %v335 = vshrl.u32 %v334, 7
      %v336 = vsub.s32 0, %v335
      %v337 = vrot.slane %v332, %v336
      %vm339 = vcmask 31744
      %v341 = vsel %vm339, %v299, 0
      %v344 = vsel %vm339, %v300, 0
      %v347 = vsel %vm339, %v301, 0
      %v350 = vsel %vm339, %v302, 0
      %v353 = vsel %vm339, %v303, 0
      %v356 = vsel %vm339, %v304, 0
      %v359 = vsel %vm339, %v305, 0
      %v362 = vsel %vm339, %v306, 0
      %v365 = vsel %vm339, %v307, 0
      %v368 = vsel %vm339, %v308, 0
      %v371 = vsel %vm339, %v309, 0
      %v374 = vsel %vm339, %v310, 0
      %v377 = vsel %vm339, %v311, 0
      %v380 = vsel %vm339, %v312, 0
      %v383 = vsel %vm339, %v313, 0
      %v386 = vsel %vm339, %v314, 0
      %v389 = vsel %vm339, %v315, 0
      %v392 = vsel %vm339, %v316, 0
      %v395 = vsel %vm339, %v317, 0
      %v398 = vsel %vm339, %v318, 0
      %v401 = vsel %vm339, %v319, 0
      %v404 = vsel %vm339, %v320, 0
      %v407 = vsel %vm339, %v321, 0
      %v410 = vsel %vm339, %v322, 0
      %v413 = vsel %vm339, %v323, 0
      %v416 = vsel %vm339, %v324, 0
      %v419 = vsel %vm339, %v325, 0
      %v422 = vsel %vm339, %v326, 0
      %v425 = vsel %vm339, %v327, 0
      %v428 = vsel %vm339, %v328, 0
      %v431 = vsel %vm339, %v329, 0
      %v434 = vsel %vm339, %v330, 0
      %vm436 = vcmask 1043456
      %v438 = vsel %vm436, %v331, 0
      %440 = vmatprep.subr.mxu0 0.0
      %441 = vmatpush1.msra.mxu0 %v438
      %442 = vmatprep.subr.mxu0 0.0
      %443 = vmatpush1.msra.mxu0 0.0
      %444 = vmatprep.subr.mxu0 0.0
      %445 = vmatpush1.msra.mxu0 0.0
      %446 = vmatprep.subr.mxu0 0.0
      %447 = vmatpush1.msra.mxu0 0.0
      %448 = vmatprep.subr.mxu0 0.0
      %449 = vmatpush1.msra.mxu0 0.0
      %450 = vmatprep.subr.mxu0 0.0
      %451 = vmatpush1.msra.mxu0 0.0
      %452 = vmatprep.subr.mxu0 0.0
      %453 = vmatpush1.msra.mxu0 0.0
      %454 = vmatprep.subr.mxu0 0.0
      %455 = vmatpush1.msra.mxu0 0.0
      %456 = vmatprep.subr.mxu0 0.0
      %457 = vmatpush1.msra.mxu0 0.0
      %458 = vmatprep.subr.mxu0 0.0
      %459 = vmatpush1.msra.mxu0 0.0
      %460 = vmatprep.subr.mxu0 0.0
      %461 = vmatpush1.msra.mxu0 0.0
      %462 = vmatprep.subr.mxu0 0.0
      %463 = vmatpush1.msra.mxu0 0.0
      %464 = vmatprep.subr.mxu0 0.0
      %465 = vmatpush1.msra.mxu0 0.0
      %466 = vmatprep.subr.mxu0 0.0
      %467 = vmatpush1.msra.mxu0 0.0
      %468 = vmatprep.subr.mxu0 0.0
      %469 = vmatpush1.msra.mxu0 0.0
      %470 = vmatprep.subr.mxu0 0.0
      %471 = vmatpush1.msra.mxu0 0.0
      %472 = vmatprep.subr.mxu0 0.0
      %473 = vmatpush1.msra.mxu0 0.0
      %474 = vmatprep.subr.mxu0 0.0
      %475 = vmatpush1.msra.mxu0 0.0
      %476 = vmatprep.subr.mxu0 0.0
      %477 = vmatpush1.msra.mxu0 0.0
      %478 = vmatprep.subr.mxu0 0.0
      %479 = vmatpush1.msra.mxu0 0.0
      %480 = vmatprep.subr.mxu0 0.0
      %481 = vmatpush1.msra.mxu0 0.0
      %482 = vmatprep.subr.mxu0 0.0
      %483 = vmatpush1.msra.mxu0 0.0
      %484 = vmatprep.subr.mxu0 0.0
      %485 = vmatpush1.msra.mxu0 0.0
      %486 = vmatprep.subr.mxu0 0.0
      %487 = vmatpush1.msra.mxu0 0.0
      %488 = vmatprep.subr.mxu0 0.0
      %489 = vmatpush1.msra.mxu0 0.0
      %490 = vmatprep.subr.mxu0 0.0
      %491 = vmatpush1.msra.mxu0 0.0
      %492 = vmatprep.subr.mxu0 0.0
      %493 = vmatpush1.msra.mxu0 0.0
      %494 = vmatprep.subr.mxu0 0.0
      %495 = vmatpush1.msra.mxu0 0.0
      %496 = vmatprep.subr.mxu0 0.0
      %497 = vmatpush1.msra.mxu0 0.0
      %498 = vmatprep.subr.mxu0 0.0
      %499 = vmatpush1.msra.mxu0 0.0
      %500 = vmatprep.subr.mxu0 0.0
      %501 = vmatpush1.msra.mxu0 0.0
      %502 = vmatprep.subr.mxu0 0.0
      %503 = vmatpush1.msra.mxu0 0.0
      %504 = vmatprep.mubr.f32.mxu0 0.0
      %505 = vmatmul.mubr.f32.gmra.mrb[0].mxu0 %v341
      %v506 = vpop.f32.mrb[0].mxu0
      %v507 = vadd.f32 %v337, %v506
      %v508 = vpop.f32.mrb[0].mxu0
      %509 = vmatprep.mubr.f32.mxu0 0.0
      %510 = vmatmul.mubr.f32.gmra.mrb[0].mxu0 %v344
      %v511 = vpop.f32.mrb[0].mxu0
      %v512 = vadd.f32 %v337, %v511
      %v513 = vpop.f32.mrb[0].mxu0
      %514 = vmatprep.mubr.f32.mxu0 0.0
      %515 = vmatmul.mubr.f32.gmra.mrb[0].mxu0 %v347
      %v516 = vpop.f32.mrb[0].mxu0
      %v517 = vadd.f32 %v337, %v516
      %v518 = vpop.f32.mrb[0].mxu0
      %519 = vmatprep.mubr.f32.mxu0 0.0
      %520 = vmatmul.mubr.f32.gmra.mrb[0].mxu0 %v350
      %v521 = vpop.f32.mrb[0].mxu0
      %v522 = vadd.f32 %v337, %v521
      %v523 = vpop.f32.mrb[0].mxu0
      %524 = vmatprep.mubr.f32.mxu0 0.0
      %525 = vmatmul.mubr.f32.gmra.mrb[0].mxu0 %v353
      %v526 = vpop.f32.mrb[0].mxu0
      %v527 = vadd.f32 %v337, %v526
      %v528 = vpop.f32.mrb[0].mxu0
      %529 = vmatprep.mubr.f32.mxu0 0.0
      %530 = vmatmul.mubr.f32.gmra.mrb[0].mxu0 %v356
      %v531 = vpop.f32.mrb[0].mxu0
      %v532 = vadd.f32 %v337, %v531
      %v533 = vpop.f32.mrb[0].mxu0
      %534 = vmatprep.mubr.f32.mxu0 0.0
      %535 = vmatmul.mubr.f32.gmra.mrb[0].mxu0 %v359
      %v536 = vpop.f32.mrb[0].mxu0
      %v537 = vadd.f32 %v337, %v536
      %v538 = vpop.f32.mrb[0].mxu0
      %539 = vmatprep.mubr.f32.mxu0 0.0
      %540 = vmatmul.mubr.f32.gmra.mrb[0].mxu0 %v362
      %v541 = vpop.f32.mrb[0].mxu0
      %v542 = vadd.f32 %v337, %v541
      %v543 = vpop.f32.mrb[0].mxu0
      %544 = vmatprep.mubr.f32.mxu0 0.0
      %545 = vmatmul.mubr.f32.gmra.mrb[0].mxu0 %v365
      %v546 = vpop.f32.mrb[0].mxu0
      %v547 = vadd.f32 %v337, %v546
      %v548 = vpop.f32.mrb[0].mxu0
      %549 = vmatprep.mubr.f32.mxu0 0.0
      %550 = vmatmul.mubr.f32.gmra.mrb[0].mxu0 %v368
      %v551 = vpop.f32.mrb[0].mxu0
      %v552 = vadd.f32 %v337, %v551
      %v553 = vpop.f32.mrb[0].mxu0
      %554 = vmatprep.mubr.f32.mxu0 0.0
      %555 = vmatmul.mubr.f32.gmra.mrb[0].mxu0 %v371
      %v556 = vpop.f32.mrb[0].mxu0
      %v557 = vadd.f32 %v337, %v556
      %v558 = vpop.f32.mrb[0].mxu0
      %559 = vmatprep.mubr.f32.mxu0 0.0
      %560 = vmatmul.mubr.f32.gmra.mrb[0].mxu0 %v374
      %v561 = vpop.f32.mrb[0].mxu0
      %v562 = vadd.f32 %v337, %v561
      %v563 = vpop.f32.mrb[0].mxu0
      %564 = vmatprep.mubr.f32.mxu0 0.0
      %565 = vmatmul.mubr.f32.gmra.mrb[0].mxu0 %v377
      %v566 = vpop.f32.mrb[0].mxu0
      %v567 = vadd.f32 %v337, %v566
      %v568 = vpop.f32.mrb[0].mxu0
      %569 = vmatprep.mubr.f32.mxu0 0.0
      %570 = vmatmul.mubr.f32.gmra.mrb[0].mxu0 %v380
      %v571 = vpop.f32.mrb[0].mxu0
      %v572 = vadd.f32 %v337, %v571
      %v573 = vpop.f32.mrb[0].mxu0
      %574 = vmatprep.mubr.f32.mxu0 0.0
      %575 = vmatmul.mubr.f32.gmra.mrb[0].mxu0 %v383
      %v576 = vpop.f32.mrb[0].mxu0
      %v577 = vadd.f32 %v337, %v576
      %v578 = vpop.f32.mrb[0].mxu0
      %579 = vmatprep.mubr.f32.mxu0 0.0
      %580 = vmatmul.mubr.f32.gmra.mrb[0].mxu0 %v386
      %v581 = vpop.f32.mrb[0].mxu0
      %v582 = vadd.f32 %v337, %v581
      %v583 = vpop.f32.mrb[0].mxu0
      %584 = vmatprep.mubr.f32.mxu0 0.0
      %585 = vmatmul.mubr.f32.gmra.mrb[0].mxu0 %v389
      %v586 = vpop.f32.mrb[0].mxu0
      %v587 = vadd.f32 %v337, %v586
      %v588 = vpop.f32.mrb[0].mxu0
      %589 = vmatprep.mubr.f32.mxu0 0.0
      %590 = vmatmul.mubr.f32.gmra.mrb[0].mxu0 %v392
      %v591 = vpop.f32.mrb[0].mxu0
      %v592 = vadd.f32 %v337, %v591
      %v593 = vpop.f32.mrb[0].mxu0
      %594 = vmatprep.mubr.f32.mxu0 0.0
      %595 = vmatmul.mubr.f32.gmra.mrb[0].mxu0 %v395
      %v596 = vpop.f32.mrb[0].mxu0
      %v597 = vadd.f32 %v337, %v596
      %v598 = vpop.f32.mrb[0].mxu0
      %599 = vmatprep.mubr.f32.mxu0 0.0
      %600 = vmatmul.mubr.f32.gmra.mrb[0].mxu0 %v398
      %v601 = vpop.f32.mrb[0].mxu0
      %v602 = vadd.f32 %v337, %v601
      %v603 = vpop.f32.mrb[0].mxu0
      %604 = vmatprep.mubr.f32.mxu0 0.0
      %605 = vmatmul.mubr.f32.gmra.mrb[0].mxu0 %v401
      %v606 = vpop.f32.mrb[0].mxu0
      %v607 = vadd.f32 %v337, %v606
      %v608 = vpop.f32.mrb[0].mxu0
      %609 = vmatprep.mubr.f32.mxu0 0.0
      %610 = vmatmul.mubr.f32.gmra.mrb[0].mxu0 %v404
      %v611 = vpop.f32.mrb[0].mxu0
      %v612 = vadd.f32 %v337, %v611
      %v613 = vpop.f32.mrb[0].mxu0
      %614 = vmatprep.mubr.f32.mxu0 0.0
      %615 = vmatmul.mubr.f32.gmra.mrb[0].mxu0 %v407
      %v616 = vpop.f32.mrb[0].mxu0
      %v617 = vadd.f32 %v337, %v616
      %v618 = vpop.f32.mrb[0].mxu0
      %619 = vmatprep.mubr.f32.mxu0 0.0
      %620 = vmatmul.mubr.f32.gmra.mrb[0].mxu0 %v410
      %v621 = vpop.f32.mrb[0].mxu0
      %v622 = vadd.f32 %v337, %v621
      %v623 = vpop.f32.mrb[0].mxu0
      %624 = vmatprep.mubr.f32.mxu0 0.0
      %625 = vmatmul.mubr.f32.gmra.mrb[0].mxu0 %v413
      %v626 = vpop.f32.mrb[0].mxu0
      %v627 = vadd.f32 %v337, %v626
      %v628 = vpop.f32.mrb[0].mxu0
      %629 = vmatprep.mubr.f32.mxu0 0.0
      %630 = vmatmul.mubr.f32.gmra.mrb[0].mxu0 %v416
      %v631 = vpop.f32.mrb[0].mxu0
      %v632 = vadd.f32 %v337, %v631
      %v633 = vpop.f32.mrb[0].mxu0
      %634 = vmatprep.mubr.f32.mxu0 0.0
      %635 = vmatmul.mubr.f32.gmra.mrb[0].mxu0 %v419
      %v636 = vpop.f32.mrb[0].mxu0
      %v637 = vadd.f32 %v337, %v636
      %v638 = vpop.f32.mrb[0].mxu0
      %639 = vmatprep.mubr.f32.mxu0 0.0
      %640 = vmatmul.mubr.f32.gmra.mrb[0].mxu0 %v422
      %v641 = vpop.f32.mrb[0].mxu0
      %v642 = vadd.f32 %v337, %v641
      %v643 = vpop.f32.mrb[0].mxu0
      %644 = vmatprep.mubr.f32.mxu0 0.0
      %645 = vmatmul.mubr.f32.gmra.mrb[0].mxu0 %v425
      %v646 = vpop.f32.mrb[0].mxu0
      %v647 = vadd.f32 %v337, %v646
      %v648 = vpop.f32.mrb[0].mxu0
      %649 = vmatprep.mubr.f32.mxu0 0.0
      %650 = vmatmul.mubr.f32.gmra.mrb[0].mxu0 %v428
      %v651 = vpop.f32.mrb[0].mxu0
      %v652 = vadd.f32 %v337, %v651
      %v653 = vpop.f32.mrb[0].mxu0
      %654 = vmatprep.mubr.f32.mxu0 0.0
      %655 = vmatmul.mubr.f32.gmra.mrb[0].mxu0 %v431
      %v656 = vpop.f32.mrb[0].mxu0
      %v657 = vadd.f32 %v337, %v656
      %v658 = vpop.f32.mrb[0].mxu0
      %659 = vmatprep.mubr.f32.mxu0 0.0
      %660 = vmatmul.mubr.f32.gmra.mrb[0].mxu0 %v434
      %v661 = vpop.f32.mrb[0].mxu0
      %v662 = vadd.f32 %v337, %v661
      %v663 = vpop.f32.mrb[0].mxu0
      %664 = vdwg.mxu0
      %v665 = vmax.f32 %v507, 0.0
      %v666 = vmax.f32 %v512, 0.0
      %v667 = vmax.f32 %v517, 0.0
      %v668 = vmax.f32 %v522, 0.0
      %v669 = vmax.f32 %v527, 0.0
      %v670 = vmax.f32 %v532, 0.0
      %v671 = vmax.f32 %v537, 0.0
      %v672 = vmax.f32 %v542, 0.0
      %v673 = vmax.f32 %v547, 0.0
      %v674 = vmax.f32 %v552, 0.0
      %v675 = vmax.f32 %v557, 0.0
      %v676 = vmax.f32 %v562, 0.0
      %v677 = vmax.f32 %v567, 0.0
      %v678 = vmax.f32 %v572, 0.0
      %v679 = vmax.f32 %v577, 0.0
      %v680 = vmax.f32 %v582, 0.0
      %v681 = vmax.f32 %v587, 0.0
      %v682 = vmax.f32 %v592, 0.0
      %v683 = vmax.f32 %v597, 0.0
      %v684 = vmax.f32 %v602, 0.0
      %v685 = vmax.f32 %v607, 0.0
      %v686 = vmax.f32 %v612, 0.0
      %v687 = vmax.f32 %v617, 0.0
      %v688 = vmax.f32 %v622, 0.0
      %v689 = vmax.f32 %v627, 0.0
      %v690 = vmax.f32 %v632, 0.0
      %v691 = vmax.f32 %v637, 0.0
      %v692 = vmax.f32 %v642, 0.0
      %v693 = vmax.f32 %v647, 0.0
      %v694 = vmax.f32 %v652, 0.0
      %v695 = vmax.f32 %v657, 0.0
      %v696 = vmax.f32 %v662, 0.0
      %v697 = vld [vmem:[%s4] sm:$0xff]
      %v698 = vld [vmem:[%s4 + $0x8] sm:$0x1]
      %v699 = vlaneseq
      %v700 = vshrl.u32 %v699, 7
      %v701 = vadd.s32 %v700, 8
      %v702 = vrot.slane %v665, 7
      %v703 = vrot.slane %v667, 7
      %v704 = vrot.slane %v669, 7
      %v705 = vrot.slane %v671, 7
      %v706 = vrot.slane %v673, 7
      %v707 = vrot.slane %v675, 7
      %v708 = vrot.slane %v677, 7
      %v709 = vrot.slane %v679, 7
      %v710 = vrot.slane %v681, 7
      %v711 = vrot.slane %v683, 7
      %v712 = vrot.slane %v685, 7
      %v713 = vrot.slane %v687, 7
      %v714 = vrot.slane %v689, 7
      %v715 = vrot.slane %v691, 7
      %v716 = vrot.slane %v693, 7
      %v717 = vrot.slane %v666, 7
      %v718 = vrot.slane %v668, 7
      %v719 = vrot.slane %v670, 7
      %v720 = vrot.slane %v672, 7
      %v721 = vrot.slane %v674, 7
      %v722 = vrot.slane %v676, 7
      %v723 = vrot.slane %v678, 7
      %v724 = vrot.slane %v680, 7
      %v725 = vrot.slane %v682, 7
      %v726 = vrot.slane %v684, 7
      %v727 = vrot.slane %v686, 7
      %v728 = vrot.slane %v688, 7
      %v729 = vrot.slane %v690, 7
      %v730 = vrot.slane %v692, 7
      %v731 = vrot.slane %v694, 7
      %vm732 = vcmp.lt.s32.totalorder %v700, 1
      %v733 = vsel %vm732, %v702, %v717
      %v734 = vsel %vm732, %v703, %v718
      %v735 = vsel %vm732, %v704, %v719
      %v736 = vsel %vm732, %v705, %v720
      %v737 = vsel %vm732, %v706, %v721
      %v738 = vsel %vm732, %v707, %v722
      %v739 = vsel %vm732, %v708, %v723
      %v740 = vsel %vm732, %v709, %v724
      %v741 = vsel %vm732, %v710, %v725
      %v742 = vsel %vm732, %v711, %v726
      %v743 = vsel %vm732, %v712, %v727
      %v744 = vsel %vm732, %v713, %v728
      %v745 = vsel %vm732, %v714, %v729
      %v746 = vsel %vm732, %v715, %v730
      %v747 = vsel %vm732, %v716, %v731
      %v748 = vsel %vm732, %v717, %v702
      %v749 = vsel %vm732, %v718, %v703
      %v750 = vsel %vm732, %v719, %v704
      %v751 = vsel %vm732, %v720, %v705
      %v752 = vsel %vm732, %v721, %v706
      %v753 = vsel %vm732, %v722, %v707
      %v754 = vsel %vm732, %v723, %v708
      %v755 = vsel %vm732, %v724, %v709
      %v756 = vsel %vm732, %v725, %v710
      %v757 = vsel %vm732, %v726, %v711
      %v758 = vsel %vm732, %v727, %v712
      %v759 = vsel %vm732, %v728, %v713
      %v760 = vsel %vm732, %v729, %v714
      %v761 = vsel %vm732, %v730, %v715
      %v762 = vsel %vm732, %v731, %v716
      %v763 = vadd.s32 %v700, 4294967295
      %v764 = vadd.s32 %v701, 4294967295
      %vm765 = vcmp.ge.s32.totalorder %v763, 0
      %vm766 = vcmp.ge.s32.totalorder %v764, 0
      %vm767 = vcmp.lt.s32.totalorder %v763, 16
      %vm768 = vcmp.lt.s32.totalorder %v764, 16
      %vm769 = vmand %vm765, %vm767
      %vm770 = vmand %vm766, %vm768
      %v771 = vsel %vm769, 0.0, 0.0
      %v772 = vsel %vm770, 0.0, 0.0
      %v773 = vsel %vm769, %v748, 0.0
      %v774 = vsel %vm770, %v733, 0.0
      %v775 = vsel %vm769, %v749, 0.0
      %v776 = vsel %vm770, %v734, 0.0
      %v777 = vsel %vm769, %v750, 0.0
      %v778 = vsel %vm770, %v735, 0.0
      %v779 = vsel %vm769, %v751, 0.0
      %v780 = vsel %vm770, %v736, 0.0
      %v781 = vsel %vm769, %v752, 0.0
      %v782 = vsel %vm770, %v737, 0.0
      %v783 = vsel %vm769, %v753, 0.0
      %v784 = vsel %vm770, %v738, 0.0
      %v785 = vsel %vm769, %v754, 0.0
      %v786 = vsel %vm770, %v739, 0.0
      %v787 = vsel %vm769, %v755, 0.0
      %v788 = vsel %vm770, %v740, 0.0
      %v789 = vsel %vm769, %v756, 0.0
      %v790 = vsel %vm770, %v741, 0.0
      %v791 = vsel %vm769, %v757, 0.0
      %v792 = vsel %vm770, %v742, 0.0
      %v793 = vsel %vm769, %v758, 0.0
      %v794 = vsel %vm770, %v743, 0.0
      %v795 = vsel %vm769, %v759, 0.0
      %v796 = vsel %vm770, %v744, 0.0
      %v797 = vsel %vm769, %v760, 0.0
      %v798 = vsel %vm770, %v745, 0.0
      %v799 = vsel %vm769, %v761, 0.0
      %v800 = vsel %vm770, %v746, 0.0
      %v801 = vsel %vm769, %v762, 0.0
      %v802 = vsel %vm770, %v747, 0.0
      %v803 = vlaneseq
      %v804 = vshrl.u32 %v803, 7
      %v805 = vsub.s32 0, %v804
      %v806 = vrot.slane %v697, %v805
      %v807 = vmul.f32 %v771, %v806
      %v808 = vmul.f32 %v772, %v806
      %v809 = vmul.f32 %v773, %v806
      %v810 = vmul.f32 %v774, %v806
      %v811 = vmul.f32 %v775, %v806
      %v812 = vmul.f32 %v776, %v806
      %v813 = vmul.f32 %v777, %v806
      %v814 = vmul.f32 %v778, %v806
      %v815 = vmul.f32 %v779, %v806
      %v816 = vmul.f32 %v780, %v806
      %v817 = vmul.f32 %v781, %v806
      %v818 = vmul.f32 %v782, %v806
      %v819 = vmul.f32 %v783, %v806
      %v820 = vmul.f32 %v784, %v806
      %v821 = vmul.f32 %v785, %v806
      %v822 = vmul.f32 %v786, %v806
      %v823 = vmul.f32 %v787, %v806
      %v824 = vmul.f32 %v788, %v806
      %v825 = vmul.f32 %v789, %v806
      %v826 = vmul.f32 %v790, %v806
      %v827 = vmul.f32 %v791, %v806
      %v828 = vmul.f32 %v792, %v806
      %v829 = vmul.f32 %v793, %v806
      %v830 = vmul.f32 %v794, %v806
      %v831 = vmul.f32 %v795, %v806
      %v832 = vmul.f32 %v796, %v806
      %v833 = vmul.f32 %v797, %v806
      %v834 = vmul.f32 %v798, %v806
      %v835 = vmul.f32 %v799, %v806
      %v836 = vmul.f32 %v800, %v806
      %v837 = vmul.f32 %v801, %v806
      %v838 = vmul.f32 %v802, %v806
      %v839 = vlaneseq
      %v840 = vshrl.u32 %v839, 7
      %v841 = vsub.s32 1, %v840
      %v842 = vrot.slane %v697, %v841
      %v843 = vmul.f32 %v842, 0.0
      %v844 = vmul.f32 %v665, %v842
      %v845 = vmul.f32 %v666, %v842
      %v846 = vmul.f32 %v667, %v842
      %v847 = vmul.f32 %v668, %v842
      %v848 = vmul.f32 %v669, %v842
      %v849 = vmul.f32 %v670, %v842
      %v850 = vmul.f32 %v671, %v842
      %v851 = vmul.f32 %v672, %v842
      %v852 = vmul.f32 %v673, %v842
      %v853 = vmul.f32 %v674, %v842
      %v854 = vmul.f32 %v675, %v842
      %v855 = vmul.f32 %v676, %v842
      %v856 = vmul.f32 %v677, %v842
      %v857 = vmul.f32 %v678, %v842
      %v858 = vmul.f32 %v679, %v842
      %v859 = vmul.f32 %v680, %v842
      %v860 = vmul.f32 %v681, %v842
      %v861 = vmul.f32 %v682, %v842
      %v862 = vmul.f32 %v683, %v842
      %v863 = vmul.f32 %v684, %v842
      %v864 = vmul.f32 %v685, %v842
      %v865 = vmul.f32 %v686, %v842
      %v866 = vmul.f32 %v687, %v842
      %v867 = vmul.f32 %v688, %v842
      %v868 = vmul.f32 %v689, %v842
      %v869 = vmul.f32 %v690, %v842
      %v870 = vmul.f32 %v691, %v842
      %v871 = vmul.f32 %v692, %v842
      %v872 = vmul.f32 %v693, %v842
      %v873 = vmul.f32 %v694, %v842
      %v874 = vadd.f32 %v807, %v843
      %v875 = vadd.f32 %v808, %v843
      %v876 = vadd.f32 %v809, %v844
      %v877 = vadd.f32 %v810, %v845
      %v878 = vadd.f32 %v811, %v846
      %v879 = vadd.f32 %v812, %v847
      %v880 = vadd.f32 %v813, %v848
      %v881 = vadd.f32 %v814, %v849
      %v882 = vadd.f32 %v815, %v850
      %v883 = vadd.f32 %v816, %v851
      %v884 = vadd.f32 %v817, %v852
      %v885 = vadd.f32 %v818, %v853
      %v886 = vadd.f32 %v819, %v854
      %v887 = vadd.f32 %v820, %v855
      %v888 = vadd.f32 %v821, %v856
      %v889 = vadd.f32 %v822, %v857
      %v890 = vadd.f32 %v823, %v858
      %v891 = vadd.f32 %v824, %v859
      %v892 = vadd.f32 %v825, %v860
      %v893 = vadd.f32 %v826, %v861
      %v894 = vadd.f32 %v827, %v862
      %v895 = vadd.f32 %v828, %v863
      %v896 = vadd.f32 %v829, %v864
      %v897 = vadd.f32 %v830, %v865
      %v898 = vadd.f32 %v831, %v866
      %v899 = vadd.f32 %v832, %v867
      %v900 = vadd.f32 %v833, %v868
      %v901 = vadd.f32 %v834, %v869
      %v902 = vadd.f32 %v835, %v870
      %v903 = vadd.f32 %v836, %v871
      %v904 = vadd.f32 %v837, %v872
      %v905 = vadd.f32 %v838, %v873
      %v906 = vrot.slane %v665, 1
      %v907 = vrot.slane %v667, 1
      %v908 = vrot.slane %v669, 1
      %v909 = vrot.slane %v671, 1
      %v910 = vrot.slane %v673, 1
      %v911 = vrot.slane %v675, 1
      %v912 = vrot.slane %v677, 1
      %v913 = vrot.slane %v679, 1
      %v914 = vrot.slane %v681, 1
      %v915 = vrot.slane %v683, 1
      %v916 = vrot.slane %v685, 1
      %v917 = vrot.slane %v687, 1
      %v918 = vrot.slane %v689, 1
      %v919 = vrot.slane %v691, 1
      %v920 = vrot.slane %v693, 1
      %v921 = vrot.slane %v666, 1
      %v922 = vrot.slane %v668, 1
      %v923 = vrot.slane %v670, 1
      %v924 = vrot.slane %v672, 1
      %v925 = vrot.slane %v674, 1
      %v926 = vrot.slane %v676, 1
      %v927 = vrot.slane %v678, 1
      %v928 = vrot.slane %v680, 1
      %v929 = vrot.slane %v682, 1
      %v930 = vrot.slane %v684, 1
      %v931 = vrot.slane %v686, 1
      %v932 = vrot.slane %v688, 1
      %v933 = vrot.slane %v690, 1
      %v934 = vrot.slane %v692, 1
      %v935 = vrot.slane %v694, 1
      %vm936 = vcmp.lt.s32.totalorder %v700, 7
      %v937 = vsel %vm936, %v906, %v921
      %v938 = vsel %vm936, %v907, %v922
      %v939 = vsel %vm936, %v908, %v923
      %v940 = vsel %vm936, %v909, %v924
      %v941 = vsel %vm936, %v910, %v925
      %v942 = vsel %vm936, %v911, %v926
      %v943 = vsel %vm936, %v912, %v927
      %v944 = vsel %vm936, %v913, %v928
      %v945 = vsel %vm936, %v914, %v929
      %v946 = vsel %vm936, %v915, %v930
      %v947 = vsel %vm936, %v916, %v931
      %v948 = vsel %vm936, %v917, %v932
      %v949 = vsel %vm936, %v918, %v933
      %v950 = vsel %vm936, %v919, %v934
      %v951 = vsel %vm936, %v920, %v935
      %v952 = vsel %vm936, %v921, %v906
      %v953 = vsel %vm936, %v922, %v907
      %v954 = vsel %vm936, %v923, %v908
      %v955 = vsel %vm936, %v924, %v909
      %v956 = vsel %vm936, %v925, %v910
      %v957 = vsel %vm936, %v926, %v911
      %v958 = vsel %vm936, %v927, %v912
      %v959 = vsel %vm936, %v928, %v913
      %v960 = vsel %vm936, %v929, %v914
      %v961 = vsel %vm936, %v930, %v915
      %v962 = vsel %vm936, %v931, %v916
      %v963 = vsel %vm936, %v932, %v917
      %v964 = vsel %vm936, %v933, %v918
      %v965 = vsel %vm936, %v934, %v919
      %v966 = vsel %vm936, %v935, %v920
      %v967 = vadd.s32 %v700, 1
      %v968 = vadd.s32 %v701, 1
      %vm969 = vcmp.ge.s32.totalorder %v967, 0
      %vm970 = vcmp.ge.s32.totalorder %v968, 0
      %vm971 = vcmp.lt.s32.totalorder %v967, 16
      %vm972 = vcmp.lt.s32.totalorder %v968, 16
      %vm973 = vmand %vm969, %vm971
      %vm974 = vmand %vm970, %vm972
      %v975 = vsel %vm973, 0.0, 0.0
      %v976 = vsel %vm974, 0.0, 0.0
      %v977 = vsel %vm973, %v937, 0.0
      %v978 = vsel %vm974, %v952, 0.0
      %v979 = vsel %vm973, %v938, 0.0
      %v980 = vsel %vm974, %v953, 0.0
      %v981 = vsel %vm973, %v939, 0.0
      %v982 = vsel %vm974, %v954, 0.0
      %v983 = vsel %vm973, %v940, 0.0
      %v984 = vsel %vm974, %v955, 0.0
      %v985 = vsel %vm973, %v941, 0.0
      %v986 = vsel %vm974, %v956, 0.0
      %v987 = vsel %vm973, %v942, 0.0
      %v988 = vsel %vm974, %v957, 0.0
      %v989 = vsel %vm973, %v943, 0.0
      %v990 = vsel %vm974, %v958, 0.0
      %v991 = vsel %vm973, %v944, 0.0
      %v992 = vsel %vm974, %v959, 0.0
      %v993 = vsel %vm973, %v945, 0.0
      %v994 = vsel %vm974, %v960, 0.0
      %v995 = vsel %vm973, %v946, 0.0
      %v996 = vsel %vm974, %v961, 0.0
      %v997 = vsel %vm973, %v947, 0.0
      %v998 = vsel %vm974, %v962, 0.0
      %v999 = vsel %vm973, %v948, 0.0
      %v1000 = vsel %vm974, %v963, 0.0
      %v1001 = vsel %vm973, %v949, 0.0
      %v1002 = vsel %vm974, %v964, 0.0
      %v1003 = vsel %vm973, %v950, 0.0
      %v1004 = vsel %vm974, %v965, 0.0
      %v1005 = vsel %vm973, %v951, 0.0
      %v1006 = vsel %vm974, %v966, 0.0
      %v1007 = vlaneseq
      %v1008 = vshrl.u32 %v1007, 7
      %v1009 = vsub.s32 2, %v1008
      %v1010 = vrot.slane %v697, %v1009
      %v1011 = vmul.f32 %v975, %v1010
      %v1012 = vmul.f32 %v976, %v1010
      %v1013 = vmul.f32 %v977, %v1010
      %v1014 = vmul.f32 %v978, %v1010
      %v1015 = vmul.f32 %v979, %v1010
      %v1016 = vmul.f32 %v980, %v1010
      %v1017 = vmul.f32 %v981, %v1010
      %v1018 = vmul.f32 %v982, %v1010
      %v1019 = vmul.f32 %v983, %v1010
      %v1020 = vmul.f32 %v984, %v1010
      %v1021 = vmul.f32 %v985, %v1010
      %v1022 = vmul.f32 %v986, %v1010
      %v1023 = vmul.f32 %v987, %v1010
      %v1024 = vmul.f32 %v988, %v1010
      %v1025 = vmul.f32 %v989, %v1010
      %v1026 = vmul.f32 %v990, %v1010
      %v1027 = vmul.f32 %v991, %v1010
      %v1028 = vmul.f32 %v992, %v1010
      %v1029 = vmul.f32 %v993, %v1010
      %v1030 = vmul.f32 %v994, %v1010
      %v1031 = vmul.f32 %v995, %v1010
      %v1032 = vmul.f32 %v996, %v1010
      %v1033 = vmul.f32 %v997, %v1010
      %v1034 = vmul.f32 %v998, %v1010
      %v1035 = vmul.f32 %v999, %v1010
      %v1036 = vmul.f32 %v1000, %v1010
      %v1037 = vmul.f32 %v1001, %v1010
      %v1038 = vmul.f32 %v1002, %v1010
      %v1039 = vmul.f32 %v1003, %v1010
      %v1040 = vmul.f32 %v1004, %v1010
      %v1041 = vmul.f32 %v1005, %v1010
      %v1042 = vmul.f32 %v1006, %v1010
      %v1043 = vadd.f32 %v874, %v1011
      %v1044 = vadd.f32 %v875, %v1012
      %v1045 = vadd.f32 %v876, %v1013
      %v1046 = vadd.f32 %v877, %v1014
      %v1047 = vadd.f32 %v878, %v1015
      %v1048 = vadd.f32 %v879, %v1016
      %v1049 = vadd.f32 %v880, %v1017
      %v1050 = vadd.f32 %v881, %v1018
      %v1051 = vadd.f32 %v882, %v1019
      %v1052 = vadd.f32 %v883, %v1020
      %v1053 = vadd.f32 %v884, %v1021
      %v1054 = vadd.f32 %v885, %v1022
      %v1055 = vadd.f32 %v886, %v1023
      %v1056 = vadd.f32 %v887, %v1024
      %v1057 = vadd.f32 %v888, %v1025
      %v1058 = vadd.f32 %v889, %v1026
      %v1059 = vadd.f32 %v890, %v1027
      %v1060 = vadd.f32 %v891, %v1028
      %v1061 = vadd.f32 %v892, %v1029
      %v1062 = vadd.f32 %v893, %v1030
      %v1063 = vadd.f32 %v894, %v1031
      %v1064 = vadd.f32 %v895, %v1032
      %v1065 = vadd.f32 %v896, %v1033
      %v1066 = vadd.f32 %v897, %v1034
      %v1067 = vadd.f32 %v898, %v1035
      %v1068 = vadd.f32 %v899, %v1036
      %v1069 = vadd.f32 %v900, %v1037
      %v1070 = vadd.f32 %v901, %v1038
      %v1071 = vadd.f32 %v902, %v1039
      %v1072 = vadd.f32 %v903, %v1040
      %v1073 = vadd.f32 %v904, %v1041
      %v1074 = vadd.f32 %v905, %v1042
      %v1075 = vrot.slane %v695, 7
      %v1076 = vrot.slane %v696, 7
      %v1077 = vsel %vm732, %v1075, %v1076
      %v1078 = vsel %vm732, %v1076, %v1075
      %v1079 = vsel %vm769, %v1078, 0.0
      %v1080 = vsel %vm770, %v1077, 0.0
      %v1081 = vlaneseq
      %v1082 = vshrl.u32 %v1081, 7
      %v1083 = vsub.s32 3, %v1082
      %v1084 = vrot.slane %v697, %v1083
      %v1085 = vmul.f32 %v773, %v1084
      %v1086 = vmul.f32 %v774, %v1084
      %v1087 = vmul.f32 %v775, %v1084
      %v1088 = vmul.f32 %v776, %v1084
      %v1089 = vmul.f32 %v777, %v1084
      %v1090 = vmul.f32 %v778, %v1084
      %v1091 = vmul.f32 %v779, %v1084
      %v1092 = vmul.f32 %v780, %v1084
      %v1093 = vmul.f32 %v781, %v1084
      %v1094 = vmul.f32 %v782, %v1084
      %v1095 = vmul.f32 %v783, %v1084
      %v1096 = vmul.f32 %v784, %v1084
      %v1097 = vmul.f32 %v785, %v1084
      %v1098 = vmul.f32 %v786, %v1084
      %v1099 = vmul.f32 %v787, %v1084
      %v1100 = vmul.f32 %v788, %v1084
      %v1101 = vmul.f32 %v789, %v1084
      %v1102 = vmul.f32 %v790, %v1084
      %v1103 = vmul.f32 %v791, %v1084
      %v1104 = vmul.f32 %v792, %v1084
      %v1105 = vmul.f32 %v793, %v1084
      %v1106 = vmul.f32 %v794, %v1084
      %v1107 = vmul.f32 %v795, %v1084
      %v1108 = vmul.f32 %v796, %v1084
      %v1109 = vmul.f32 %v797, %v1084
      %v1110 = vmul.f32 %v798, %v1084
      %v1111 = vmul.f32 %v799, %v1084
      %v1112 = vmul.f32 %v800, %v1084
      %v1113 = vmul.f32 %v801, %v1084
      %v1114 = vmul.f32 %v802, %v1084
      %v1115 = vmul.f32 %v1079, %v1084
      %v1116 = vmul.f32 %v1080, %v1084
      %v1117 = vadd.f32 %v1043, %v1085
      %v1118 = vadd.f32 %v1044, %v1086
      %v1119 = vadd.f32 %v1045, %v1087
      %v1120 = vadd.f32 %v1046, %v1088
      %v1121 = vadd.f32 %v1047, %v1089
      %v1122 = vadd.f32 %v1048, %v1090
      %v1123 = vadd.f32 %v1049, %v1091
      %v1124 = vadd.f32 %v1050, %v1092
      %v1125 = vadd.f32 %v1051, %v1093
      %v1126 = vadd.f32 %v1052, %v1094
      %v1127 = vadd.f32 %v1053, %v1095
      %v1128 = vadd.f32 %v1054, %v1096
      %v1129 = vadd.f32 %v1055, %v1097
      %v1130 = vadd.f32 %v1056, %v1098
      %v1131 = vadd.f32 %v1057, %v1099
      %v1132 = vadd.f32 %v1058, %v1100
      %v1133 = vadd.f32 %v1059, %v1101
      %v1134 = vadd.f32 %v1060, %v1102
      %v1135 = vadd.f32 %v1061, %v1103
      %v1136 = vadd.f32 %v1062, %v1104
      %v1137 = vadd.f32 %v1063, %v1105
      %v1138 = vadd.f32 %v1064, %v1106
      %v1139 = vadd.f32 %v1065, %v1107
      %v1140 = vadd.f32 %v1066, %v1108
      %v1141 = vadd.f32 %v1067, %v1109
      %v1142 = vadd.f32 %v1068, %v1110
      %v1143 = vadd.f32 %v1069, %v1111
      %v1144 = vadd.f32 %v1070, %v1112
      %v1145 = vadd.f32 %v1071, %v1113
      %v1146 = vadd.f32 %v1072, %v1114
      %v1147 = vadd.f32 %v1073, %v1115
      %v1148 = vadd.f32 %v1074, %v1116
      %v1149 = vlaneseq
      %v1150 = vshrl.u32 %v1149, 7
      %v1151 = vsub.s32 4, %v1150
      %v1152 = vrot.slane %v697, %v1151
      %v1153 = vmul.f32 %v665, %v1152
      %v1154 = vmul.f32 %v666, %v1152
      %v1155 = vmul.f32 %v667, %v1152
      %v1156 = vmul.f32 %v668, %v1152
      %v1157 = vmul.f32 %v669, %v1152
      %v1158 = vmul.f32 %v670, %v1152
      %v1159 = vmul.f32 %v671, %v1152
      %v1160 = vmul.f32 %v672, %v1152
      %v1161 = vmul.f32 %v673, %v1152
      %v1162 = vmul.f32 %v674, %v1152
      %v1163 = vmul.f32 %v675, %v1152
      %v1164 = vmul.f32 %v676, %v1152
      %v1165 = vmul.f32 %v677, %v1152
      %v1166 = vmul.f32 %v678, %v1152
      %v1167 = vmul.f32 %v679, %v1152
      %v1168 = vmul.f32 %v680, %v1152
      %v1169 = vmul.f32 %v681, %v1152
      %v1170 = vmul.f32 %v682, %v1152
      %v1171 = vmul.f32 %v683, %v1152
      %v1172 = vmul.f32 %v684, %v1152
      %v1173 = vmul.f32 %v685, %v1152
      %v1174 = vmul.f32 %v686, %v1152
      %v1175 = vmul.f32 %v687, %v1152
      %v1176 = vmul.f32 %v688, %v1152
      %v1177 = vmul.f32 %v689, %v1152
      %v1178 = vmul.f32 %v690, %v1152
      %v1179 = vmul.f32 %v691, %v1152
      %v1180 = vmul.f32 %v692, %v1152
      %v1181 = vmul.f32 %v693, %v1152
      %v1182 = vmul.f32 %v694, %v1152
      %v1183 = vmul.f32 %v695, %v1152
      %v1184 = vmul.f32 %v696, %v1152
      %v1185 = vadd.f32 %v1117, %v1153
      %v1186 = vadd.f32 %v1118, %v1154
      %v1187 = vadd.f32 %v1119, %v1155
      %v1188 = vadd.f32 %v1120, %v1156
      %v1189 = vadd.f32 %v1121, %v1157
      %v1190 = vadd.f32 %v1122, %v1158
      %v1191 = vadd.f32 %v1123, %v1159
      %v1192 = vadd.f32 %v1124, %v1160
      %v1193 = vadd.f32 %v1125, %v1161
      %v1194 = vadd.f32 %v1126, %v1162
      %v1195 = vadd.f32 %v1127, %v1163
      %v1196 = vadd.f32 %v1128, %v1164
      %v1197 = vadd.f32 %v1129, %v1165
      %v1198 = vadd.f32 %v1130, %v1166
      %v1199 = vadd.f32 %v1131, %v1167
      %v1200 = vadd.f32 %v1132, %v1168
      %v1201 = vadd.f32 %v1133, %v1169
      %v1202 = vadd.f32 %v1134, %v1170
      %v1203 = vadd.f32 %v1135, %v1171
      %v1204 = vadd.f32 %v1136, %v1172
      %v1205 = vadd.f32 %v1137, %v1173
      %v1206 = vadd.f32 %v1138, %v1174
      %v1207 = vadd.f32 %v1139, %v1175
      %v1208 = vadd.f32 %v1140, %v1176
      %v1209 = vadd.f32 %v1141, %v1177
      %v1210 = vadd.f32 %v1142, %v1178
      %v1211 = vadd.f32 %v1143, %v1179
      %v1212 = vadd.f32 %v1144, %v1180
      %v1213 = vadd.f32 %v1145, %v1181
      %v1214 = vadd.f32 %v1146, %v1182
      %v1215 = vadd.f32 %v1147, %v1183
      %v1216 = vadd.f32 %v1148, %v1184
      %v1217 = vrot.slane %v695, 1
      %v1218 = vrot.slane %v696, 1
      %v1219 = vsel %vm936, %v1217, %v1218
      %v1220 = vsel %vm936, %v1218, %v1217
      %v1221 = vsel %vm973, %v1219, 0.0
      %v1222 = vsel %vm974, %v1220, 0.0
      %v1223 = vlaneseq
      %v1224 = vshrl.u32 %v1223, 7
      %v1225 = vsub.s32 5, %v1224
      %v1226 = vrot.slane %v697, %v1225
      %v1227 = vmul.f32 %v977, %v1226
      %v1228 = vmul.f32 %v978, %v1226
      %v1229 = vmul.f32 %v979, %v1226
      %v1230 = vmul.f32 %v980, %v1226
      %v1231 = vmul.f32 %v981, %v1226
      %v1232 = vmul.f32 %v982, %v1226
      %v1233 = vmul.f32 %v983, %v1226
      %v1234 = vmul.f32 %v984, %v1226
      %v1235 = vmul.f32 %v985, %v1226
      %v1236 = vmul.f32 %v986, %v1226
      %v1237 = vmul.f32 %v987, %v1226
      %v1238 = vmul.f32 %v988, %v1226
      %v1239 = vmul.f32 %v989, %v1226
      %v1240 = vmul.f32 %v990, %v1226
      %v1241 = vmul.f32 %v991, %v1226
      %v1242 = vmul.f32 %v992, %v1226
      %v1243 = vmul.f32 %v993, %v1226
      %v1244 = vmul.f32 %v994, %v1226
      %v1245 = vmul.f32 %v995, %v1226
      %v1246 = vmul.f32 %v996, %v1226
      %v1247 = vmul.f32 %v997, %v1226
      %v1248 = vmul.f32 %v998, %v1226
      %v1249 = vmul.f32 %v999, %v1226
      %v1250 = vmul.f32 %v1000, %v1226
      %v1251 = vmul.f32 %v1001, %v1226
      %v1252 = vmul.f32 %v1002, %v1226
      %v1253 = vmul.f32 %v1003, %v1226
      %v1254 = vmul.f32 %v1004, %v1226
      %v1255 = vmul.f32 %v1005, %v1226
      %v1256 = vmul.f32 %v1006, %v1226
      %v1257 = vmul.f32 %v1221, %v1226
      %v1258 = vmul.f32 %v1222, %v1226
      %v1259 = vadd.f32 %v1185, %v1227
      %v1260 = vadd.f32 %v1186, %v1228
      %v1261 = vadd.f32 %v1187, %v1229
      %v1262 = vadd.f32 %v1188, %v1230
      %v1263 = vadd.f32 %v1189, %v1231
      %v1264 = vadd.f32 %v1190, %v1232
      %v1265 = vadd.f32 %v1191, %v1233
      %v1266 = vadd.f32 %v1192, %v1234
      %v1267 = vadd.f32 %v1193, %v1235
      %v1268 = vadd.f32 %v1194, %v1236
      %v1269 = vadd.f32 %v1195, %v1237
      %v1270 = vadd.f32 %v1196, %v1238
      %v1271 = vadd.f32 %v1197, %v1239
      %v1272 = vadd.f32 %v1198, %v1240
      %v1273 = vadd.f32 %v1199, %v1241
      %v1274 = vadd.f32 %v1200, %v1242
      %v1275 = vadd.f32 %v1201, %v1243
      %v1276 = vadd.f32 %v1202, %v1244
      %v1277 = vadd.f32 %v1203, %v1245
      %v1278 = vadd.f32 %v1204, %v1246
      %v1279 = vadd.f32 %v1205, %v1247
      %v1280 = vadd.f32 %v1206, %v1248
      %v1281 = vadd.f32 %v1207, %v1249
      %v1282 = vadd.f32 %v1208, %v1250
      %v1283 = vadd.f32 %v1209, %v1251
      %v1284 = vadd.f32 %v1210, %v1252
      %v1285 = vadd.f32 %v1211, %v1253
      %v1286 = vadd.f32 %v1212, %v1254
      %v1287 = vadd.f32 %v1213, %v1255
      %v1288 = vadd.f32 %v1214, %v1256
      %v1289 = vadd.f32 %v1215, %v1257
      %v1290 = vadd.f32 %v1216, %v1258
      %v1291 = vlaneseq
      %v1292 = vshrl.u32 %v1291, 7
      %v1293 = vsub.s32 6, %v1292
      %v1294 = vrot.slane %v697, %v1293
      %v1295 = vmul.f32 %v775, %v1294
      %v1296 = vmul.f32 %v776, %v1294
      %v1297 = vmul.f32 %v777, %v1294
      %v1298 = vmul.f32 %v778, %v1294
      %v1299 = vmul.f32 %v779, %v1294
      %v1300 = vmul.f32 %v780, %v1294
      %v1301 = vmul.f32 %v781, %v1294
      %v1302 = vmul.f32 %v782, %v1294
      %v1303 = vmul.f32 %v783, %v1294
      %v1304 = vmul.f32 %v784, %v1294
      %v1305 = vmul.f32 %v785, %v1294
      %v1306 = vmul.f32 %v786, %v1294
      %v1307 = vmul.f32 %v787, %v1294
      %v1308 = vmul.f32 %v788, %v1294
      %v1309 = vmul.f32 %v789, %v1294
      %v1310 = vmul.f32 %v790, %v1294
      %v1311 = vmul.f32 %v791, %v1294
      %v1312 = vmul.f32 %v792, %v1294
      %v1313 = vmul.f32 %v793, %v1294
      %v1314 = vmul.f32 %v794, %v1294
      %v1315 = vmul.f32 %v795, %v1294
      %v1316 = vmul.f32 %v796, %v1294
      %v1317 = vmul.f32 %v797, %v1294
      %v1318 = vmul.f32 %v798, %v1294
      %v1319 = vmul.f32 %v799, %v1294
      %v1320 = vmul.f32 %v800, %v1294
      %v1321 = vmul.f32 %v801, %v1294
      %v1322 = vmul.f32 %v802, %v1294
      %v1323 = vmul.f32 %v1079, %v1294
      %v1324 = vmul.f32 %v1080, %v1294
      %v1325 = vmul.f32 %v771, %v1294
      %v1326 = vmul.f32 %v772, %v1294
      %v1327 = vadd.f32 %v1259, %v1295
      %v1328 = vadd.f32 %v1260, %v1296
      %v1329 = vadd.f32 %v1261, %v1297
      %v1330 = vadd.f32 %v1262, %v1298
      %v1331 = vadd.f32 %v1263, %v1299
      %v1332 = vadd.f32 %v1264, %v1300
      %v1333 = vadd.f32 %v1265, %v1301
      %v1334 = vadd.f32 %v1266, %v1302
      %v1335 = vadd.f32 %v1267, %v1303
      %v1336 = vadd.f32 %v1268, %v1304
      %v1337 = vadd.f32 %v1269, %v1305
      %v1338 = vadd.f32 %v1270, %v1306
      %v1339 = vadd.f32 %v1271, %v1307
      %v1340 = vadd.f32 %v1272, %v1308
      %v1341 = vadd.f32 %v1273, %v1309
      %v1342 = vadd.f32 %v1274, %v1310
      %v1343 = vadd.f32 %v1275, %v1311
      %v1344 = vadd.f32 %v1276, %v1312
      %v1345 = vadd.f32 %v1277, %v1313
      %v1346 = vadd.f32 %v1278, %v1314
      %v1347 = vadd.f32 %v1279, %v1315
      %v1348 = vadd.f32 %v1280, %v1316
      %v1349 = vadd.f32 %v1281, %v1317
      %v1350 = vadd.f32 %v1282, %v1318
      %v1351 = vadd.f32 %v1283, %v1319
      %v1352 = vadd.f32 %v1284, %v1320
      %v1353 = vadd.f32 %v1285, %v1321
      %v1354 = vadd.f32 %v1286, %v1322
      %v1355 = vadd.f32 %v1287, %v1323
      %v1356 = vadd.f32 %v1288, %v1324
      %v1357 = vadd.f32 %v1289, %v1325
      %v1358 = vadd.f32 %v1290, %v1326
      %v1359 = vlaneseq
      %v1360 = vshrl.u32 %v1359, 7
      %v1361 = vsub.s32 7, %v1360
      %v1362 = vrot.slane %v697, %v1361
      %v1363 = vmul.f32 %v667, %v1362
      %v1364 = vmul.f32 %v668, %v1362
      %v1365 = vmul.f32 %v669, %v1362
      %v1366 = vmul.f32 %v670, %v1362
      %v1367 = vmul.f32 %v671, %v1362
      %v1368 = vmul.f32 %v672, %v1362
      %v1369 = vmul.f32 %v673, %v1362
      %v1370 = vmul.f32 %v674, %v1362
      %v1371 = vmul.f32 %v675, %v1362
      %v1372 = vmul.f32 %v676, %v1362
      %v1373 = vmul.f32 %v677, %v1362
      %v1374 = vmul.f32 %v678, %v1362
      %v1375 = vmul.f32 %v679, %v1362
      %v1376 = vmul.f32 %v680, %v1362
      %v1377 = vmul.f32 %v681, %v1362
      %v1378 = vmul.f32 %v682, %v1362
      %v1379 = vmul.f32 %v683, %v1362
      %v1380 = vmul.f32 %v684, %v1362
      %v1381 = vmul.f32 %v685, %v1362
      %v1382 = vmul.f32 %v686, %v1362
      %v1383 = vmul.f32 %v687, %v1362
      %v1384 = vmul.f32 %v688, %v1362
      %v1385 = vmul.f32 %v689, %v1362
      %v1386 = vmul.f32 %v690, %v1362
      %v1387 = vmul.f32 %v691, %v1362
      %v1388 = vmul.f32 %v692, %v1362
      %v1389 = vmul.f32 %v693, %v1362
      %v1390 = vmul.f32 %v694, %v1362
      %v1391 = vmul.f32 %v695, %v1362
      %v1392 = vmul.f32 %v696, %v1362
      %v1393 = vmul.f32 %v1362, 0.0
      %v1394 = vadd.f32 %v1327, %v1363
      %v1395 = vadd.f32 %v1328, %v1364
      %v1396 = vadd.f32 %v1329, %v1365
      %v1397 = vadd.f32 %v1330, %v1366
      %v1398 = vadd.f32 %v1331, %v1367
      %v1399 = vadd.f32 %v1332, %v1368
      %v1400 = vadd.f32 %v1333, %v1369
      %v1401 = vadd.f32 %v1334, %v1370
      %v1402 = vadd.f32 %v1335, %v1371
      %v1403 = vadd.f32 %v1336, %v1372
      %v1404 = vadd.f32 %v1337, %v1373
      %v1405 = vadd.f32 %v1338, %v1374
      %v1406 = vadd.f32 %v1339, %v1375
      %v1407 = vadd.f32 %v1340, %v1376
      %v1408 = vadd.f32 %v1341, %v1377
      %v1409 = vadd.f32 %v1342, %v1378
      %v1410 = vadd.f32 %v1343, %v1379
      %v1411 = vadd.f32 %v1344, %v1380
      %v1412 = vadd.f32 %v1345, %v1381
      %v1413 = vadd.f32 %v1346, %v1382
      %v1414 = vadd.f32 %v1347, %v1383
      %v1415 = vadd.f32 %v1348, %v1384
      %v1416 = vadd.f32 %v1349, %v1385
      %v1417 = vadd.f32 %v1350, %v1386
      %v1418 = vadd.f32 %v1351, %v1387
      %v1419 = vadd.f32 %v1352, %v1388
      %v1420 = vadd.f32 %v1353, %v1389
      %v1421 = vadd.f32 %v1354, %v1390
      %v1422 = vadd.f32 %v1355, %v1391
      %v1423 = vadd.f32 %v1356, %v1392
      %v1424 = vadd.f32 %v1357, %v1393
      %v1425 = vadd.f32 %v1358, %v1393
      %v1426 = vlaneseq
      %v1427 = vshrl.u32 %v1426, 7
      %v1428 = vsub.s32 0, %v1427
      %v1429 = vrot.slane %v698, %v1428
      %v1430 = vmul.f32 %v979, %v1429
      %v1431 = vmul.f32 %v980, %v1429
      %v1432 = vmul.f32 %v981, %v1429
      %v1433 = vmul.f32 %v982, %v1429
      %v1434 = vmul.f32 %v983, %v1429
      %v1435 = vmul.f32 %v984, %v1429
      %v1436 = vmul.f32 %v985, %v1429
      %v1437 = vmul.f32 %v986, %v1429
      %v1438 = vmul.f32 %v987, %v1429
      %v1439 = vmul.f32 %v988, %v1429
      %v1440 = vmul.f32 %v989, %v1429
      %v1441 = vmul.f32 %v990, %v1429
      %v1442 = vmul.f32 %v991, %v1429
      %v1443 = vmul.f32 %v992, %v1429
      %v1444 = vmul.f32 %v993, %v1429
      %v1445 = vmul.f32 %v994, %v1429
      %v1446 = vmul.f32 %v995, %v1429
      %v1447 = vmul.f32 %v996, %v1429
      %v1448 = vmul.f32 %v997, %v1429
      %v1449 = vmul.f32 %v998, %v1429
      %v1450 = vmul.f32 %v999, %v1429
      %v1451 = vmul.f32 %v1000, %v1429
      %v1452 = vmul.f32 %v1001, %v1429
      %v1453 = vmul.f32 %v1002, %v1429
      %v1454 = vmul.f32 %v1003, %v1429
      %v1455 = vmul.f32 %v1004, %v1429
      %v1456 = vmul.f32 %v1005, %v1429
      %v1457 = vmul.f32 %v1006, %v1429
      %v1458 = vmul.f32 %v1221, %v1429
      %v1459 = vmul.f32 %v1222, %v1429
      %v1460 = vmul.f32 %v975, %v1429
      %v1461 = vmul.f32 %v976, %v1429
      %v1462 = vadd.f32 %v1394, %v1430
      %v1463 = vadd.f32 %v1395, %v1431
      %v1464 = vadd.f32 %v1396, %v1432
      %v1465 = vadd.f32 %v1397, %v1433
      %v1466 = vadd.f32 %v1398, %v1434
      %v1467 = vadd.f32 %v1399, %v1435
      %v1468 = vadd.f32 %v1400, %v1436
      %v1469 = vadd.f32 %v1401, %v1437
      %v1470 = vadd.f32 %v1402, %v1438
      %v1471 = vadd.f32 %v1403, %v1439
      %v1472 = vadd.f32 %v1404, %v1440
      %v1473 = vadd.f32 %v1405, %v1441
      %v1474 = vadd.f32 %v1406, %v1442
      %v1475 = vadd.f32 %v1407, %v1443
      %v1476 = vadd.f32 %v1408, %v1444
      %v1477 = vadd.f32 %v1409, %v1445
      %v1478 = vadd.f32 %v1410, %v1446
      %v1479 = vadd.f32 %v1411, %v1447
      %v1480 = vadd.f32 %v1412, %v1448
      %v1481 = vadd.f32 %v1413, %v1449
      %v1482 = vadd.f32 %v1414, %v1450
      %v1483 = vadd.f32 %v1415, %v1451
      %v1484 = vadd.f32 %v1416, %v1452
      %v1485 = vadd.f32 %v1417, %v1453
      %v1486 = vadd.f32 %v1418, %v1454
      %v1487 = vadd.f32 %v1419, %v1455
      %v1488 = vadd.f32 %v1420, %v1456
      %v1489 = vadd.f32 %v1421, %v1457
      %v1490 = vadd.f32 %v1422, %v1458
      %v1491 = vadd.f32 %v1423, %v1459
      %v1492 = vadd.f32 %v1424, %v1460
      %v1493 = vadd.f32 %v1425, %v1461
      %v1494 = vld [vmem:[%s5] sm:$0xf]
      %v1495 = vld [vmem:[%s6] sm:$0x1]
      %v1497 = vlaneseq
      %v1498 = vshrl.u32 %v1497, 7
      %v1499 = vsub.s32 0, %v1498
      %v1500 = vrot.slane %v1495, %v1499
      %v1503 = vsel %vm339, %v1462, 0
      %v1506 = vsel %vm339, %v1463, 0
      %v1509 = vsel %vm339, %v1464, 0
      %v1512 = vsel %vm339, %v1465, 0
      %v1515 = vsel %vm339, %v1466, 0
      %v1518 = vsel %vm339, %v1467, 0
      %v1521 = vsel %vm339, %v1468, 0
      %v1524 = vsel %vm339, %v1469, 0
      %v1527 = vsel %vm339, %v1470, 0
      %v1530 = vsel %vm339, %v1471, 0
      %v1533 = vsel %vm339, %v1472, 0
      %v1536 = vsel %vm339, %v1473, 0
      %v1539 = vsel %vm339, %v1474, 0
      %v1542 = vsel %vm339, %v1475, 0
      %v1545 = vsel %vm339, %v1476, 0
      %v1548 = vsel %vm339, %v1477, 0
      %v1551 = vsel %vm339, %v1478, 0
      %v1554 = vsel %vm339, %v1479, 0
      %v1557 = vsel %vm339, %v1480, 0
      %v1560 = vsel %vm339, %v1481, 0
      %v1563 = vsel %vm339, %v1482, 0
      %v1566 = vsel %vm339, %v1483, 0
      %v1569 = vsel %vm339, %v1484, 0
      %v1572 = vsel %vm339, %v1485, 0
      %v1575 = vsel %vm339, %v1486, 0
      %v1578 = vsel %vm339, %v1487, 0
      %v1581 = vsel %vm339, %v1488, 0
      %v1584 = vsel %vm339, %v1489, 0
      %v1587 = vsel %vm339, %v1490, 0
      %v1590 = vsel %vm339, %v1491, 0
      %v1593 = vsel %vm339, %v1492, 0
      %v1596 = vsel %vm339, %v1493, 0
      %v1599 = vsel %vm436, %v1494, 0
      %1601 = vmatprep.subr.mxu0 0.0
      %1602 = vmatpush1.msra.mxu0 %v1599
      %1603 = vmatprep.subr.mxu0 0.0
      %1604 = vmatpush1.msra.mxu0 0.0
      %1605 = vmatprep.subr.mxu0 0.0
      %1606 = vmatpush1.msra.mxu0 0.0
      %1607 = vmatprep.subr.mxu0 0.0
      %1608 = vmatpush1.msra.mxu0 0.0
      %1609 = vmatprep.subr.mxu0 0.0
      %1610 = vmatpush1.msra.mxu0 0.0
      %1611 = vmatprep.subr.mxu0 0.0
      %1612 = vmatpush1.msra.mxu0 0.0
      %1613 = vmatprep.subr.mxu0 0.0
      %1614 = vmatpush1.msra.mxu0 0.0
      %1615 = vmatprep.subr.mxu0 0.0
      %1616 = vmatpush1.msra.mxu0 0.0
      %1617 = vmatprep.subr.mxu0 0.0
      %1618 = vmatpush1.msra.mxu0 0.0
      %1619 = vmatprep.subr.mxu0 0.0
      %1620 = vmatpush1.msra.mxu0 0.0
      %1621 = vmatprep.subr.mxu0 0.0
      %1622 = vmatpush1.msra.mxu0 0.0
      %1623 = vmatprep.subr.mxu0 0.0
      %1624 = vmatpush1.msra.mxu0 0.0
      %1625 = vmatprep.subr.mxu0 0.0
      %1626 = vmatpush1.msra.mxu0 0.0
      %1627 = vmatprep.subr.mxu0 0.0
      %1628 = vmatpush1.msra.mxu0 0.0
      %1629 = vmatprep.subr.mxu0 0.0
      %1630 = vmatpush1.msra.mxu0 0.0
      %1631 = vmatprep.subr.mxu0 0.0
      %1632 = vmatpush1.msra.mxu0 0.0
      %1633 = vmatprep.subr.mxu0 0.0
      %1634 = vmatpush1.msra.mxu0 0.0
      %1635 = vmatprep.subr.mxu0 0.0
      %1636 = vmatpush1.msra.mxu0 0.0
      %1637 = vmatprep.subr.mxu0 0.0
      %1638 = vmatpush1.msra.mxu0 0.0
      %1639 = vmatprep.subr.mxu0 0.0
      %1640 = vmatpush1.msra.mxu0 0.0
      %1641 = vmatprep.subr.mxu0 0.0
      %1642 = vmatpush1.msra.mxu0 0.0
      %1643 = vmatprep.subr.mxu0 0.0
      %1644 = vmatpush1.msra.mxu0 0.0
      %1645 = vmatprep.subr.mxu0 0.0
      %1646 = vmatpush1.msra.mxu0 0.0
      %1647 = vmatprep.subr.mxu0 0.0
      %1648 = vmatpush1.msra.mxu0 0.0
      %1649 = vmatprep.subr.mxu0 0.0
      %1650 = vmatpush1.msra.mxu0 0.0
      %1651 = vmatprep.subr.mxu0 0.0
      %1652 = vmatpush1.msra.mxu0 0.0
      %1653 = vmatprep.subr.mxu0 0.0
      %1654 = vmatpush1.msra.mxu0 0.0
      %1655 = vmatprep.subr.mxu0 0.0
      %1656 = vmatpush1.msra.mxu0 0.0
      %1657 = vmatprep.subr.mxu0 0.0
      %1658 = vmatpush1.msra.mxu0 0.0
      %1659 = vmatprep.subr.mxu0 0.0
      %1660 = vmatpush1.msra.mxu0 0.0
      %1661 = vmatprep.subr.mxu0 0.0
      %1662 = vmatpush1.msra.mxu0 0.0
      %1663 = vmatprep.subr.mxu0 0.0
      %1664 = vmatpush1.msra.mxu0 0.0
      %1665 = vmatprep.mubr.f32.mxu0 0.0
      %1666 = vmatmul.mubr.f32.gmra.mrb[0].mxu0 %v1503
      %v1667 = vpop.f32.mrb[0].mxu0
      %v1668 = vadd.f32 %v1500, %v1667
      %v1669 = vpop.f32.mrb[0].mxu0
      %1670 = vmatprep.mubr.f32.mxu0 0.0
      %1671 = vmatmul.mubr.f32.gmra.mrb[0].mxu0 %v1506
      %v1672 = vpop.f32.mrb[0].mxu0
      %v1673 = vadd.f32 %v1500, %v1672
      %v1674 = vpop.f32.mrb[0].mxu0
      %1675 = vmatprep.mubr.f32.mxu0 0.0
      %1676 = vmatmul.mubr.f32.gmra.mrb[0].mxu0 %v1509
      %v1677 = vpop.f32.mrb[0].mxu0
      %v1678 = vadd.f32 %v1500, %v1677
      %v1679 = vpop.f32.mrb[0].mxu0
      %1680 = vmatprep.mubr.f32.mxu0 0.0
      %1681 = vmatmul.mubr.f32.gmra.mrb[0].mxu0 %v1512
      %v1682 = vpop.f32.mrb[0].mxu0
      %v1683 = vadd.f32 %v1500, %v1682
      %v1684 = vpop.f32.mrb[0].mxu0
      %1685 = vmatprep.mubr.f32.mxu0 0.0
      %1686 = vmatmul.mubr.f32.gmra.mrb[0].mxu0 %v1515
      %v1687 = vpop.f32.mrb[0].mxu0
      %v1688 = vadd.f32 %v1500, %v1687
      %v1689 = vpop.f32.mrb[0].mxu0
      %1690 = vmatprep.mubr.f32.mxu0 0.0
      %1691 = vmatmul.mubr.f32.gmra.mrb[0].mxu0 %v1518
      %v1692 = vpop.f32.mrb[0].mxu0
      %v1693 = vadd.f32 %v1500, %v1692
      %v1694 = vpop.f32.mrb[0].mxu0
      %1695 = vmatprep.mubr.f32.mxu0 0.0
      %1696 = vmatmul.mubr.f32.gmra.mrb[0].mxu0 %v1521
      %v1697 = vpop.f32.mrb[0].mxu0
      %v1698 = vadd.f32 %v1500, %v1697
      %v1699 = vpop.f32.mrb[0].mxu0
      %1700 = vmatprep.mubr.f32.mxu0 0.0
      %1701 = vmatmul.mubr.f32.gmra.mrb[0].mxu0 %v1524
      %v1702 = vpop.f32.mrb[0].mxu0
      %v1703 = vadd.f32 %v1500, %v1702
      %v1704 = vpop.f32.mrb[0].mxu0
      %1705 = vmatprep.mubr.f32.mxu0 0.0
      %1706 = vmatmul.mubr.f32.gmra.mrb[0].mxu0 %v1527
      %v1707 = vpop.f32.mrb[0].mxu0
      %v1708 = vadd.f32 %v1500, %v1707
      %v1709 = vpop.f32.mrb[0].mxu0
      %1710 = vmatprep.mubr.f32.mxu0 0.0
      %1711 = vmatmul.mubr.f32.gmra.mrb[0].mxu0 %v1530
      %v1712 = vpop.f32.mrb[0].mxu0
      %v1713 = vadd.f32 %v1500, %v1712
      %v1714 = vpop.f32.mrb[0].mxu0
      %1715 = vmatprep.mubr.f32.mxu0 0.0
      %1716 = vmatmul.mubr.f32.gmra.mrb[0].mxu0 %v1533
      %v1717 = vpop.f32.mrb[0].mxu0
      %v1718 = vadd.f32 %v1500, %v1717
      %v1719 = vpop.f32.mrb[0].mxu0
      %1720 = vmatprep.mubr.f32.mxu0 0.0
      %1721 = vmatmul.mubr.f32.gmra.mrb[0].mxu0 %v1536
      %v1722 = vpop.f32.mrb[0].mxu0
      %v1723 = vadd.f32 %v1500, %v1722
      %v1724 = vpop.f32.mrb[0].mxu0
      %1725 = vmatprep.mubr.f32.mxu0 0.0
      %1726 = vmatmul.mubr.f32.gmra.mrb[0].mxu0 %v1539
      %v1727 = vpop.f32.mrb[0].mxu0
      %v1728 = vadd.f32 %v1500, %v1727
      %v1729 = vpop.f32.mrb[0].mxu0
      %1730 = vmatprep.mubr.f32.mxu0 0.0
      %1731 = vmatmul.mubr.f32.gmra.mrb[0].mxu0 %v1542
      %v1732 = vpop.f32.mrb[0].mxu0
      %v1733 = vadd.f32 %v1500, %v1732
      %v1734 = vpop.f32.mrb[0].mxu0
      %1735 = vmatprep.mubr.f32.mxu0 0.0
      %1736 = vmatmul.mubr.f32.gmra.mrb[0].mxu0 %v1545
      %v1737 = vpop.f32.mrb[0].mxu0
      %v1738 = vadd.f32 %v1500, %v1737
      %v1739 = vpop.f32.mrb[0].mxu0
      %1740 = vmatprep.mubr.f32.mxu0 0.0
      %1741 = vmatmul.mubr.f32.gmra.mrb[0].mxu0 %v1548
      %v1742 = vpop.f32.mrb[0].mxu0
      %v1743 = vadd.f32 %v1500, %v1742
      %v1744 = vpop.f32.mrb[0].mxu0
      %1745 = vmatprep.mubr.f32.mxu0 0.0
      %1746 = vmatmul.mubr.f32.gmra.mrb[0].mxu0 %v1551
      %v1747 = vpop.f32.mrb[0].mxu0
      %v1748 = vadd.f32 %v1500, %v1747
      %v1749 = vpop.f32.mrb[0].mxu0
      %1750 = vmatprep.mubr.f32.mxu0 0.0
      %1751 = vmatmul.mubr.f32.gmra.mrb[0].mxu0 %v1554
      %v1752 = vpop.f32.mrb[0].mxu0
      %v1753 = vadd.f32 %v1500, %v1752
      %v1754 = vpop.f32.mrb[0].mxu0
      %1755 = vmatprep.mubr.f32.mxu0 0.0
      %1756 = vmatmul.mubr.f32.gmra.mrb[0].mxu0 %v1557
      %v1757 = vpop.f32.mrb[0].mxu0
      %v1758 = vadd.f32 %v1500, %v1757
      %v1759 = vpop.f32.mrb[0].mxu0
      %1760 = vmatprep.mubr.f32.mxu0 0.0
      %1761 = vmatmul.mubr.f32.gmra.mrb[0].mxu0 %v1560
      %v1762 = vpop.f32.mrb[0].mxu0
      %v1763 = vadd.f32 %v1500, %v1762
      %v1764 = vpop.f32.mrb[0].mxu0
      %1765 = vmatprep.mubr.f32.mxu0 0.0
      %1766 = vmatmul.mubr.f32.gmra.mrb[0].mxu0 %v1563
      %v1767 = vpop.f32.mrb[0].mxu0
      %v1768 = vadd.f32 %v1500, %v1767
      %v1769 = vpop.f32.mrb[0].mxu0
      %1770 = vmatprep.mubr.f32.mxu0 0.0
      %1771 = vmatmul.mubr.f32.gmra.mrb[0].mxu0 %v1566
      %v1772 = vpop.f32.mrb[0].mxu0
      %v1773 = vadd.f32 %v1500, %v1772
      %v1774 = vpop.f32.mrb[0].mxu0
      %1775 = vmatprep.mubr.f32.mxu0 0.0
      %1776 = vmatmul.mubr.f32.gmra.mrb[0].mxu0 %v1569
      %v1777 = vpop.f32.mrb[0].mxu0
      %v1778 = vadd.f32 %v1500, %v1777
      %v1779 = vpop.f32.mrb[0].mxu0
      %1780 = vmatprep.mubr.f32.mxu0 0.0
      %1781 = vmatmul.mubr.f32.gmra.mrb[0].mxu0 %v1572
      %v1782 = vpop.f32.mrb[0].mxu0
      %v1783 = vadd.f32 %v1500, %v1782
      %v1784 = vpop.f32.mrb[0].mxu0
      %1785 = vmatprep.mubr.f32.mxu0 0.0
      %1786 = vmatmul.mubr.f32.gmra.mrb[0].mxu0 %v1575
      %v1787 = vpop.f32.mrb[0].mxu0
      %v1788 = vadd.f32 %v1500, %v1787
      %v1789 = vpop.f32.mrb[0].mxu0
      %1790 = vmatprep.mubr.f32.mxu0 0.0
      %1791 = vmatmul.mubr.f32.gmra.mrb[0].mxu0 %v1578
      %v1792 = vpop.f32.mrb[0].mxu0
      %v1793 = vadd.f32 %v1500, %v1792
      %v1794 = vpop.f32.mrb[0].mxu0
      %1795 = vmatprep.mubr.f32.mxu0 0.0
      %1796 = vmatmul.mubr.f32.gmra.mrb[0].mxu0 %v1581
      %v1797 = vpop.f32.mrb[0].mxu0
      %v1798 = vadd.f32 %v1500, %v1797
      %v1799 = vpop.f32.mrb[0].mxu0
      %1800 = vmatprep.mubr.f32.mxu0 0.0
      %1801 = vmatmul.mubr.f32.gmra.mrb[0].mxu0 %v1584
      %v1802 = vpop.f32.mrb[0].mxu0
      %v1803 = vadd.f32 %v1500, %v1802
      %v1804 = vpop.f32.mrb[0].mxu0
      %1805 = vmatprep.mubr.f32.mxu0 0.0
      %1806 = vmatmul.mubr.f32.gmra.mrb[0].mxu0 %v1587
      %v1807 = vpop.f32.mrb[0].mxu0
      %v1808 = vadd.f32 %v1500, %v1807
      %v1809 = vpop.f32.mrb[0].mxu0
      %1810 = vmatprep.mubr.f32.mxu0 0.0
      %1811 = vmatmul.mubr.f32.gmra.mrb[0].mxu0 %v1590
      %v1812 = vpop.f32.mrb[0].mxu0
      %v1813 = vadd.f32 %v1500, %v1812
      %v1814 = vpop.f32.mrb[0].mxu0
      %1815 = vmatprep.mubr.f32.mxu0 0.0
      %1816 = vmatmul.mubr.f32.gmra.mrb[0].mxu0 %v1593
      %v1817 = vpop.f32.mrb[0].mxu0
      %v1818 = vadd.f32 %v1500, %v1817
      %v1819 = vpop.f32.mrb[0].mxu0
      %1820 = vmatprep.mubr.f32.mxu0 0.0
      %1821 = vmatmul.mubr.f32.gmra.mrb[0].mxu0 %v1596
      %v1822 = vpop.f32.mrb[0].mxu0
      %v1823 = vadd.f32 %v1500, %v1822
      %v1824 = vpop.f32.mrb[0].mxu0
      %1825 = vdwg.mxu0
      %v1826 = vmax.f32 %v1668, 0.0
      %v1827 = vmax.f32 %v1673, 0.0
      %v1828 = vmax.f32 %v1678, 0.0
      %v1829 = vmax.f32 %v1683, 0.0
      %v1830 = vmax.f32 %v1688, 0.0
      %v1831 = vmax.f32 %v1693, 0.0
      %v1832 = vmax.f32 %v1698, 0.0
      %v1833 = vmax.f32 %v1703, 0.0
      %v1834 = vmax.f32 %v1708, 0.0
      %v1835 = vmax.f32 %v1713, 0.0
      %v1836 = vmax.f32 %v1718, 0.0
      %v1837 = vmax.f32 %v1723, 0.0
      %v1838 = vmax.f32 %v1728, 0.0
      %v1839 = vmax.f32 %v1733, 0.0
      %v1840 = vmax.f32 %v1738, 0.0
      %v1841 = vmax.f32 %v1743, 0.0
      %v1842 = vmax.f32 %v1748, 0.0
      %v1843 = vmax.f32 %v1753, 0.0
      %v1844 = vmax.f32 %v1758, 0.0
      %v1845 = vmax.f32 %v1763, 0.0
      %v1846 = vmax.f32 %v1768, 0.0
      %v1847 = vmax.f32 %v1773, 0.0
      %v1848 = vmax.f32 %v1778, 0.0
      %v1849 = vmax.f32 %v1783, 0.0
      %v1850 = vmax.f32 %v1788, 0.0
      %v1851 = vmax.f32 %v1793, 0.0
      %v1852 = vmax.f32 %v1798, 0.0
      %v1853 = vmax.f32 %v1803, 0.0
      %v1854 = vmax.f32 %v1808, 0.0
      %v1855 = vmax.f32 %v1813, 0.0
      %v1856 = vmax.f32 %v1818, 0.0
      %v1857 = vmax.f32 %v1823, 0.0
      %v1858 = vld [vmem:[%s288] sm:$0xff]
      %v1859 = vld [vmem:[%s288 + $0x8] sm:$0xff]
      %v1860 = vld [vmem:[%s288 + $0x10] sm:$0xff]
      %v1861 = vld [vmem:[%s288 + $0x18] sm:$0xff]
      %v1862 = vld [vmem:[%s288 + $0x20] sm:$0xff]
      %v1863 = vld [vmem:[%s288 + $0x28] sm:$0xff]
      %v1864 = vld [vmem:[%s288 + $0x30] sm:$0xff]
      %v1865 = vld [vmem:[%s288 + $0x38] sm:$0xff]
      %v1866 = vld [vmem:[%s288 + $0x40] sm:$0xff]
      %v1867 = vld [vmem:[%s288 + $0x48] sm:$0xff]
      %v1868 = vld [vmem:[%s288 + $0x50] sm:$0xff]
      %v1869 = vld [vmem:[%s288 + $0x58] sm:$0xff]
      %v1870 = vld [vmem:[%s288 + $0x60] sm:$0xff]
      %v1871 = vld [vmem:[%s288 + $0x68] sm:$0xff]
      %v1872 = vld [vmem:[%s288 + $0x70] sm:$0xff]
      %v1873 = vld [vmem:[%s288 + $0x78] sm:$0xff]
      %v1874 = vld [vmem:[%s288 + $0x80] sm:$0xff]
      %v1875 = vld [vmem:[%s288 + $0x88] sm:$0xff]
      %v1876 = vld [vmem:[%s288 + $0x90] sm:$0xff]
      %v1877 = vld [vmem:[%s288 + $0x98] sm:$0xff]
      %v1878 = vld [vmem:[%s288 + $0xa0] sm:$0xff]
      %v1879 = vld [vmem:[%s288 + $0xa8] sm:$0xff]
      %v1880 = vld [vmem:[%s288 + $0xb0] sm:$0xff]
      %v1881 = vld [vmem:[%s288 + $0xb8] sm:$0xff]
      %v1882 = vld [vmem:[%s288 + $0xc0] sm:$0xff]
      %v1883 = vld [vmem:[%s288 + $0xc8] sm:$0xff]
      %v1884 = vld [vmem:[%s288 + $0xd0] sm:$0xff]
      %v1885 = vld [vmem:[%s288 + $0xd8] sm:$0xff]
      %v1886 = vld [vmem:[%s288 + $0xe0] sm:$0xff]
      %v1887 = vld [vmem:[%s288 + $0xe8] sm:$0xff]
      %v1888 = vld [vmem:[%s288 + $0xf0] sm:$0xff]
      %v1889 = vld [vmem:[%s288 + $0xf8] sm:$0xff]
      %1890 = vst.msk [vmem:[%s298] sm:$0xff] %vm339, %v1858
      %1891 = vst.msk [vmem:[%s298 + $0x8] sm:$0xff] %vm339, %v1859
      %1892 = vst.msk [vmem:[%s298 + $0x10] sm:$0xff] %vm339, %v1860
      %1893 = vst.msk [vmem:[%s298 + $0x18] sm:$0xff] %vm339, %v1861
      %1894 = vst.msk [vmem:[%s298 + $0x20] sm:$0xff] %vm339, %v1862
      %1895 = vst.msk [vmem:[%s298 + $0x28] sm:$0xff] %vm339, %v1863
      %1896 = vst.msk [vmem:[%s298 + $0x30] sm:$0xff] %vm339, %v1864
      %1897 = vst.msk [vmem:[%s298 + $0x38] sm:$0xff] %vm339, %v1865
      %1898 = vst.msk [vmem:[%s298 + $0x40] sm:$0xff] %vm339, %v1866
      %1899 = vst.msk [vmem:[%s298 + $0x48] sm:$0xff] %vm339, %v1867
      %1900 = vst.msk [vmem:[%s298 + $0x50] sm:$0xff] %vm339, %v1868
      %1901 = vst.msk [vmem:[%s298 + $0x58] sm:$0xff] %vm339, %v1869
      %1902 = vst.msk [vmem:[%s298 + $0x60] sm:$0xff] %vm339, %v1870
      %1903 = vst.msk [vmem:[%s298 + $0x68] sm:$0xff] %vm339, %v1871
      %1904 = vst.msk [vmem:[%s298 + $0x70] sm:$0xff] %vm339, %v1872
      %1905 = vst.msk [vmem:[%s298 + $0x78] sm:$0xff] %vm339, %v1873
      %1906 = vst.msk [vmem:[%s298 + $0x80] sm:$0xff] %vm339, %v1874
      %1907 = vst.msk [vmem:[%s298 + $0x88] sm:$0xff] %vm339, %v1875
      %1908 = vst.msk [vmem:[%s298 + $0x90] sm:$0xff] %vm339, %v1876
      %1909 = vst.msk [vmem:[%s298 + $0x98] sm:$0xff] %vm339, %v1877
      %1910 = vst.msk [vmem:[%s298 + $0xa0] sm:$0xff] %vm339, %v1878
      %1911 = vst.msk [vmem:[%s298 + $0xa8] sm:$0xff] %vm339, %v1879
      %1912 = vst.msk [vmem:[%s298 + $0xb0] sm:$0xff] %vm339, %v1880
      %1913 = vst.msk [vmem:[%s298 + $0xb8] sm:$0xff] %vm339, %v1881
      %1914 = vst.msk [vmem:[%s298 + $0xc0] sm:$0xff] %vm339, %v1882
      %1915 = vst.msk [vmem:[%s298 + $0xc8] sm:$0xff] %vm339, %v1883
      %1916 = vst.msk [vmem:[%s298 + $0xd0] sm:$0xff] %vm339, %v1884
      %1917 = vst.msk [vmem:[%s298 + $0xd8] sm:$0xff] %vm339, %v1885
      %1918 = vst.msk [vmem:[%s298 + $0xe0] sm:$0xff] %vm339, %v1886
      %1919 = vst.msk [vmem:[%s298 + $0xe8] sm:$0xff] %vm339, %v1887
      %1920 = vst.msk [vmem:[%s298 + $0xf0] sm:$0xff] %vm339, %v1888
      %1921 = vst.msk [vmem:[%s298 + $0xf8] sm:$0xff] %vm339, %v1889
      %1954 = vrot.lane.b32.xlu0 %v1826, 4
      %v1955 = vpop.permute.xlu0 %1954
      %1956 = vrot.lane.b32.xlu0 %v1827, 4
      %v1957 = vpop.permute.xlu0 %1956
      %1958 = vrot.lane.b32.xlu0 %v1828, 4
      %v1959 = vpop.permute.xlu0 %1958
      %1960 = vrot.lane.b32.xlu0 %v1829, 4
      %v1961 = vpop.permute.xlu0 %1960
      %1962 = vrot.lane.b32.xlu0 %v1830, 4
      %v1963 = vpop.permute.xlu0 %1962
      %1964 = vrot.lane.b32.xlu0 %v1831, 4
      %v1965 = vpop.permute.xlu0 %1964
      %1966 = vrot.lane.b32.xlu0 %v1832, 4
      %v1967 = vpop.permute.xlu0 %1966
      %1968 = vrot.lane.b32.xlu0 %v1833, 4
      %v1969 = vpop.permute.xlu0 %1968
      %1970 = vrot.lane.b32.xlu0 %v1834, 4
      %v1971 = vpop.permute.xlu0 %1970
      %1972 = vrot.lane.b32.xlu0 %v1835, 4
      %v1973 = vpop.permute.xlu0 %1972
      %1974 = vrot.lane.b32.xlu0 %v1836, 4
      %v1975 = vpop.permute.xlu0 %1974
      %1976 = vrot.lane.b32.xlu0 %v1837, 4
      %v1977 = vpop.permute.xlu0 %1976
      %1978 = vrot.lane.b32.xlu0 %v1838, 4
      %v1979 = vpop.permute.xlu0 %1978
      %1980 = vrot.lane.b32.xlu0 %v1839, 4
      %v1981 = vpop.permute.xlu0 %1980
      %1982 = vrot.lane.b32.xlu0 %v1840, 4
      %v1983 = vpop.permute.xlu0 %1982
      %1984 = vrot.lane.b32.xlu0 %v1841, 4
      %v1985 = vpop.permute.xlu0 %1984
      %1986 = vrot.lane.b32.xlu0 %v1842, 4
      %v1987 = vpop.permute.xlu0 %1986
      %1988 = vrot.lane.b32.xlu0 %v1843, 4
      %v1989 = vpop.permute.xlu0 %1988
      %1990 = vrot.lane.b32.xlu0 %v1844, 4
      %v1991 = vpop.permute.xlu0 %1990
      %1992 = vrot.lane.b32.xlu0 %v1845, 4
      %v1993 = vpop.permute.xlu0 %1992
      %1994 = vrot.lane.b32.xlu0 %v1846, 4
      %v1995 = vpop.permute.xlu0 %1994
      %1996 = vrot.lane.b32.xlu0 %v1847, 4
      %v1997 = vpop.permute.xlu0 %1996
      %1998 = vrot.lane.b32.xlu0 %v1848, 4
      %v1999 = vpop.permute.xlu0 %1998
      %2000 = vrot.lane.b32.xlu0 %v1849, 4
      %v2001 = vpop.permute.xlu0 %2000
      %2002 = vrot.lane.b32.xlu0 %v1850, 4
      %v2003 = vpop.permute.xlu0 %2002
      %2004 = vrot.lane.b32.xlu0 %v1851, 4
      %v2005 = vpop.permute.xlu0 %2004
      %2006 = vrot.lane.b32.xlu0 %v1852, 4
      %v2007 = vpop.permute.xlu0 %2006
      %2008 = vrot.lane.b32.xlu0 %v1853, 4
      %v2009 = vpop.permute.xlu0 %2008
      %2010 = vrot.lane.b32.xlu0 %v1854, 4
      %v2011 = vpop.permute.xlu0 %2010
      %2012 = vrot.lane.b32.xlu0 %v1855, 4
      %v2013 = vpop.permute.xlu0 %2012
      %2014 = vrot.lane.b32.xlu0 %v1856, 4
      %v2015 = vpop.permute.xlu0 %2014
      %2016 = vrot.lane.b32.xlu0 %v1857, 4
      %v2017 = vpop.permute.xlu0 %2016
      %vm2050 = vcmask 64544
      %2051 = vst.msk [vmem:[%s298] sm:$0xff] %vm2050, %v1955
      %2052 = vst.msk [vmem:[%s298 + $0x8] sm:$0xff] %vm2050, %v1957
      %2053 = vst.msk [vmem:[%s298 + $0x10] sm:$0xff] %vm2050, %v1959
      %2054 = vst.msk [vmem:[%s298 + $0x18] sm:$0xff] %vm2050, %v1961
      %2055 = vst.msk [vmem:[%s298 + $0x20] sm:$0xff] %vm2050, %v1963
      %2056 = vst.msk [vmem:[%s298 + $0x28] sm:$0xff] %vm2050, %v1965
      %2057 = vst.msk [vmem:[%s298 + $0x30] sm:$0xff] %vm2050, %v1967
      %2058 = vst.msk [vmem:[%s298 + $0x38] sm:$0xff] %vm2050, %v1969
      %2059 = vst.msk [vmem:[%s298 + $0x40] sm:$0xff] %vm2050, %v1971
      %2060 = vst.msk [vmem:[%s298 + $0x48] sm:$0xff] %vm2050, %v1973
      %2061 = vst.msk [vmem:[%s298 + $0x50] sm:$0xff] %vm2050, %v1975
      %2062 = vst.msk [vmem:[%s298 + $0x58] sm:$0xff] %vm2050, %v1977
      %2063 = vst.msk [vmem:[%s298 + $0x60] sm:$0xff] %vm2050, %v1979
      %2064 = vst.msk [vmem:[%s298 + $0x68] sm:$0xff] %vm2050, %v1981
      %2065 = vst.msk [vmem:[%s298 + $0x70] sm:$0xff] %vm2050, %v1983
      %2066 = vst.msk [vmem:[%s298 + $0x78] sm:$0xff] %vm2050, %v1985
      %2067 = vst.msk [vmem:[%s298 + $0x80] sm:$0xff] %vm2050, %v1987
      %2068 = vst.msk [vmem:[%s298 + $0x88] sm:$0xff] %vm2050, %v1989
      %2069 = vst.msk [vmem:[%s298 + $0x90] sm:$0xff] %vm2050, %v1991
      %2070 = vst.msk [vmem:[%s298 + $0x98] sm:$0xff] %vm2050, %v1993
      %2071 = vst.msk [vmem:[%s298 + $0xa0] sm:$0xff] %vm2050, %v1995
      %2072 = vst.msk [vmem:[%s298 + $0xa8] sm:$0xff] %vm2050, %v1997
      %2073 = vst.msk [vmem:[%s298 + $0xb0] sm:$0xff] %vm2050, %v1999
      %2074 = vst.msk [vmem:[%s298 + $0xb8] sm:$0xff] %vm2050, %v2001
      %2075 = vst.msk [vmem:[%s298 + $0xc0] sm:$0xff] %vm2050, %v2003
      %2076 = vst.msk [vmem:[%s298 + $0xc8] sm:$0xff] %vm2050, %v2005
      %2077 = vst.msk [vmem:[%s298 + $0xd0] sm:$0xff] %vm2050, %v2007
      %2078 = vst.msk [vmem:[%s298 + $0xd8] sm:$0xff] %vm2050, %v2009
      %2079 = vst.msk [vmem:[%s298 + $0xe0] sm:$0xff] %vm2050, %v2011
      %2080 = vst.msk [vmem:[%s298 + $0xe8] sm:$0xff] %vm2050, %v2013
      %2081 = vst.msk [vmem:[%s298 + $0xf0] sm:$0xff] %vm2050, %v2015
      %2082 = vst.msk [vmem:[%s298 + $0xf8] sm:$0xff] %vm2050, %v2017
      %p2083 = scmp.lt.s32.totalorder %s18, 1
      %s2084 = scalar_select %p2083, %s18, 1
      %s2085 = smul.addr %s2084, 32
      %s2086 = smul.addr %s2085, 8
      %s2087 = scalar_lea.vmem %s7, %s2086
      // Predicated region
      $region49: #{tpu_custom_call.1} parent=47 // pred_check
        %p2088 = pneg %p193
      $region50: #{tpu_custom_call.1} parent=47 // pred_check_branch
        %2090 = sbr.rel (%p2088) target = $region52
      $region51: #{tpu_custom_call.1} parent=47 // pred_region
        _
      $region52: #{tpu_custom_call.1} parent=47 // pred_fallthru
        _
    $region48: #{tpu_custom_call.1} parent=5 // pred_fallthru
      _
    %p2091 = scmp.le.s32.totalorder 2, %s13
    // Predicated region
    $region53: #{tpu_custom_call.1} parent=5 // pred_check
      %p2092 = pneg %p2091
    $region54: #{tpu_custom_call.1} parent=5 // pred_check_branch
      %2094 = sbr.rel (%p2092) target = $region56
    $region55: #{tpu_custom_call.1} parent=5 // pred_region
      %s2095 = ssub.s32 %s13, 2
      // Predicated region
      $region57: #{tpu_custom_call.1} parent=55 // pred_check
        %p2096 = pneg %p199
      $region58: #{tpu_custom_call.1} parent=55 // pred_check_branch
        %2098 = sbr.rel (%p2096) target = $region60
      $region59: #{tpu_custom_call.1} parent=55 // pred_region
        %p2099 = scmp.lt.s32.totalorder %s19, 1
        %s2100 = scalar_select %p2099, %s19, 1
        %s2101 = smul.addr %s2100, 32
        %s2102 = smul.addr %s2101, 8
        %s2103 = scalar_lea.vmem %s7, %s2102
      $region60: #{tpu_custom_call.1} parent=55 // pred_fallthru
        _
    $region56: #{tpu_custom_call.1} parent=5 // pred_fallthru
      _
  $region6: #{tpu_custom_call.1} parent=0 // loop_footer
    %s17 = sadd.s32 1, %s13
  $region7: #{tpu_custom_call.1} parent=0 // loop_footer_branch
    %12 = sbr.rel target = $region3
  $region8: #{tpu_custom_call.1} parent=0 // loop_exit
    _

</llo_original>
